<compile_context>
chip_gen: v7x
topology: tpu7x:2x2x1
jax: 0.10.0
libtpu: 0.0.40
codegen_flags: <defaults>
</compile_context>

<pallas_src>
import numpy as np
import jax
import jax.numpy as jnp
from jax.experimental import pallas as pl
from jax.experimental.pallas import tpu as pltpu

# ----------------------- small synthetic configuration -----------------------
EMBED = 32                              # embed_dim
OUT_CHANS = 3
INPUT_SIZE = 16
OUTPUT_SIZE = 32
PATCH = 8
OVERLAP = 4
K = PATCH + 2 * OVERLAP                 # 16  (ConvTranspose2d kernel == stride)
KK = K * K                              # 256
NH = OUTPUT_SIZE // PATCH               # 4
NW = NH
NP_ = NH * NW                           # 16 patches per image
S2 = OUTPUT_SIZE + 2 * OVERLAP          # 40  padded canvas
PAD = (OUTPUT_SIZE - INPUT_SIZE) // 2   # 8
B = 2
NOUT = OUT_CHANS * KK                   # 768  (lane-dense)
OO = OUTPUT_SIZE * OUTPUT_SIZE          # 1024 (lane-dense)
CKO = K * OUTPUT_SIZE                   # 512  per-channel column stride of V
NV = OUT_CHANS * CKO                    # 1536 columns of W3 / V


# --------------------- one-time weight preprocessing (== module init) ---------
def prepare_params(weight, bias):
    """Fold ConvTranspose2d weight + column overlap-add scatter + 1/col-count into
    W3; keep Wf for the patches output; pre-tile epilogue constants."""
    w = np.asarray(weight, np.float32)                      # (EMBED, C, K, K)
    b = np.asarray(bias, np.float32)                        # (C,)

    # overlap counts along one spatial axis (rows == cols by symmetry)
    cnt = np.zeros(S2, np.float32)
    for j in range(NW):
        cnt[j * PATCH:j * PATCH + K] += 1.0
    inv = np.where(cnt > 0, 1.0 / np.maximum(cnt, 1.0), 0.0)  # (S2,)

    # patches projection: (EMBED, C*K*K), columns ordered (c, p1, p2)
    wf = w.reshape(EMBED, NOUT)
    brow = np.repeat(b, KK)[None, :]                          # (1, NOUT)

    # W3[(j,e), (c,p1,s)] = w[e,c,p1, s+OVERLAP-j*PATCH] / col_count(s+OVERLAP)
    w3 = np.zeros((NW, EMBED, OUT_CHANS, K, OUTPUT_SIZE), np.float32)
    for j in range(NW):
        for s in range(OUTPUT_SIZE):
            p2 = s + OVERLAP - j * PATCH
            if 0 <= p2 < K:
                w3[j, :, :, :, s] = w[:, :, :, p2] * inv[s + OVERLAP]
    w3 = w3.reshape(NW * EMBED, NV)                           # (128, 1536)

    # epilogue constants, all (1, C*OO), columns ordered (c, r, s)
    keep = np.ones((OUTPUT_SIZE, OUTPUT_SIZE), np.float32)
    keep[PAD:OUTPUT_SIZE - PAD, PAD:OUTPUT_SIZE - PAD] = 0.0
    row_inv = inv[OVERLAP:OVERLAP + OUTPUT_SIZE]              # 1/row-count (cropped)
    oscale2d = keep * row_inv[:, None]                        # keep(r,s)/cnt_row(r+4)
    oscale = np.broadcast_to(oscale2d[None], (OUT_CHANS, OUTPUT_SIZE, OUTPUT_SIZE)) \
        .reshape(1, OUT_CHANS * OO).copy()
    bkeep = (b[:, None, None] * keep[None]).reshape(1, OUT_CHANS * OO)
    cmask = np.broadcast_to((1.0 - keep)[None], (OUT_CHANS, OUTPUT_SIZE, OUTPUT_SIZE)) \
        .reshape(1, OUT_CHANS * OO).copy()

    return (jnp.asarray(wf, jnp.bfloat16), jnp.asarray(w3, jnp.bfloat16),
            jnp.asarray(brow, jnp.float32), jnp.asarray(oscale, jnp.float32),
            jnp.asarray(bkeep, jnp.float32), jnp.asarray(cmask, jnp.float32))


# -------------------------------- fused kernel --------------------------------
def _fused_kernel(xp_ref, xr_ref, gt_ref, wf_ref, w3_ref, brow_ref,
                  oscale_ref, bkeep_ref, cmask_ref, patches_ref, out_ref):
    # 1) ConvTranspose2d on a 1x1 input == (B*NP_, E) @ (E, C*K*K) on the MXU.
    y = jnp.dot(xp_ref[...], wf_ref[...],
                preferred_element_type=jnp.float32) + brow_ref[...]
    for b in range(B):
        for c in range(OUT_CHANS):
            patches_ref[b, c] = y[b * NP_:(b + 1) * NP_, c * KK:(c + 1) * KK]

    # 2) Column-direction overlap-add (and 1/col-count) folded into W3:
    #    (B*NH, NW*E) @ (NW*E, C*K*OUT) -> rows (b,i), cols (c, p1, s).
    v = jnp.dot(xr_ref[...], w3_ref[...], preferred_element_type=jnp.float32)

    # 3) Row-direction overlap-add: static, 128-lane-aligned shifted adds.
    rows = []
    for b in range(B):
        chans = []
        for c in range(OUT_CHANS):
            chan = None
            for i in range(NH):
                r_lo = max(0, i * PATCH - OVERLAP)               # cropped out rows
                r_hi = min(OUTPUT_SIZE, i * PATCH - OVERLAP + K)
                p_lo = r_lo + OVERLAP - i * PATCH                # kernel rows p1
                p_hi = r_hi + OVERLAP - i * PATCH
                src = v[b * NH + i: b * NH + i + 1,
                        c * CKO + p_lo * OUTPUT_SIZE: c * CKO + p_hi * OUTPUT_SIZE]
                pieces = []
                if r_lo:
                    pieces.append(jnp.zeros((1, r_lo * OUTPUT_SIZE), jnp.float32))
                pieces.append(src)
                if r_hi < OUTPUT_SIZE:
                    pieces.append(jnp.zeros(
                        (1, (OUTPUT_SIZE - r_hi) * OUTPUT_SIZE), jnp.float32))
                contrib = pieces[0] if len(pieces) == 1 else \
                    jnp.concatenate(pieces, axis=1)              # (1, OO)
                chan = contrib if chan is None else chan + contrib
            chans.append(chan)                                   # (1, OO)
        rows.append(jnp.concatenate(chans, axis=1))              # (1, C*OO)
    acc = jnp.concatenate(rows, axis=0)                          # (B, C*OO)

    # 4) epilogue: 1/row-count * keep + bias + gt center paste, one lane-dense store.
    out_ref[...] = (acc * oscale_ref[...] + bkeep_ref[...]
                    + gt_ref[...] * cmask_ref[...])


def _fused_call(xp, xr, gt_flat, wf, w3, brow, oscale, bkeep, cmask):
    return pl.pallas_call(
        _fused_kernel,
        out_shape=(
            jax.ShapeDtypeStruct((B, OUT_CHANS, NP_, KK), jnp.float32),
            jax.ShapeDtypeStruct((B, OUT_CHANS * OO), jnp.float32),
        ),
        grid=(1,),                                               # single invocation
        in_specs=[
            pl.BlockSpec((B * NP_, EMBED), lambda i: (0, 0)),              # x (bf16)
            pl.BlockSpec((B * NH, NW * EMBED), lambda i: (0, 0)),          # x rows (b,i)
            pl.BlockSpec((B, OUT_CHANS * OO), lambda i: (0, 0)),           # gt flat (f32)
            pl.BlockSpec((EMBED, NOUT), lambda i: (0, 0)),                 # Wf (bf16)
            pl.BlockSpec((NW * EMBED, NV), lambda i: (0, 0)),              # W3 (bf16)
            pl.BlockSpec((1, NOUT), lambda i: (0, 0)),                     # bias row
            pl.BlockSpec((1, OUT_CHANS * OO), lambda i: (0, 0)),           # keep/row-count
            pl.BlockSpec((1, OUT_CHANS * OO), lambda i: (0, 0)),           # bias*keep
            pl.BlockSpec((1, OUT_CHANS * OO), lambda i: (0, 0)),           # center mask
        ],
        out_specs=(
            pl.BlockSpec((B, OUT_CHANS, NP_, KK), lambda i: (0, 0, 0, 0)),
            pl.BlockSpec((B, OUT_CHANS * OO), lambda i: (0, 0)),
        ),
        compiler_params=pltpu.CompilerParams(
            dimension_semantics=("arbitrary",)),
    )(xp, xr, gt_flat, wf, w3, brow, oscale, bkeep, cmask)


# --------------------------------- forward ------------------------------------
@jax.jit
def patch_smoothing_forward(x, gt_inner, wf, w3, brow, oscale, bkeep, cmask):
    xb = x.astype(jnp.bfloat16)
    xp = xb.reshape(B * NP_, EMBED)             # rows (b, i, j)      — contiguous
    xr = xb.reshape(B * NH, NW * EMBED)         # rows (b, i), cols (j, e) — contiguous
    gt_flat = gt_inner.astype(jnp.float32).reshape(B, OUT_CHANS * OO)
    patches_flat, out_flat = _fused_call(xp, xr, gt_flat, wf, w3,
                                         brow, oscale, bkeep, cmask)
    output = out_flat.reshape(B, OUT_CHANS, OUTPUT_SIZE, OUTPUT_SIZE)
    output_patches = patches_flat.reshape(B, OUT_CHANS, NH, NW, K, K)
    return output, output_patches


# ----------------------------- numpy reference --------------------------------
def _reference_np(x, gt, weight, bias):
    xf = np.asarray(x, np.float64).reshape(B * NP_, EMBED)
    wf = np.asarray(weight, np.float64).reshape(EMBED, NOUT)
    y = xf @ wf + np.repeat(np.asarray(bias, np.float64), KK)[None, :]
    patches = y.reshape(B, NH, NW, OUT_CHANS, K, K).transpose(0, 3, 1, 2, 4, 5)
    canvas = np.zeros((B, OUT_CHANS, S2, S2))
    mask = np.zeros((S2, S2))
    for i in range(NH):
        for j in range(NW):
            canvas[:, :, i * PATCH:i * PATCH + K,
                   j * PATCH:j * PATCH + K] += patches[:, :, i, j]
            mask[i * PATCH:i * PATCH + K, j * PATCH:j * PATCH + K] += 1.0
    inv = np.where(mask != 0, 1.0 / np.where(mask == 0, 1.0, mask), 0.0)
    out = canvas * inv[None, None]
    out = out[:, :, OVERLAP:OVERLAP + OUTPUT_SIZE,
              OVERLAP:OVERLAP + OUTPUT_SIZE].copy()
    out[:, :, PAD:OUTPUT_SIZE - PAD, PAD:OUTPUT_SIZE - PAD] = \
        np.asarray(gt, np.float64)[:, :, PAD:OUTPUT_SIZE - PAD,
                                   PAD:OUTPUT_SIZE - PAD]
    return out, patches


if __name__ == "__main__":
    key = jax.random.PRNGKey(0)
    k1, k2, k3, k4 = jax.random.split(key, 4)
    x = jax.random.normal(k1, (B, NP_, EMBED), jnp.float32)
    gt_inner = jax.random.normal(
        k2, (B, OUT_CHANS, OUTPUT_SIZE, OUTPUT_SIZE), jnp.float32)
    # deterministic ConvTranspose2d parameters
    weight = jax.random.normal(k3, (EMBED, OUT_CHANS, K, K), jnp.float32) * 0.02
    bias = jax.random.normal(k4, (OUT_CHANS,), jnp.float32) * 0.02

    wf, w3, brow, oscale, bkeep, cmask = prepare_params(weight, bias)
    out, out_patches = patch_smoothing_forward(
        x, gt_inner, wf, w3, brow, oscale, bkeep, cmask)
    jax.block_until_ready((out, out_patches))

    ref_out, ref_patches = _reference_np(x, gt_inner, weight, bias)
    # tolerances account for bf16 storage + single-pass bf16 MXU (f32 accumulate)
    assert np.allclose(np.asarray(out_patches), ref_patches,
                       rtol=2e-3, atol=2e-3), "output_patches mismatch"
    assert np.allclose(np.asarray(out), ref_out,
                       rtol=2e-3, atol=2e-3), "output mismatch"
    print("KERNEL_OK")
</pallas_src>

<mosaic_0001>
module attributes {stable_mosaic.version = 11 : i64} {
  func.func @_fused_kernel(%arg0: i32, %arg1: memref<32x32xbf16, #tpu.memory_space<vmem>>, %arg2: memref<8x128xbf16, #tpu.memory_space<vmem>>, %arg3: memref<2x3072xf32, #tpu.memory_space<vmem>>, %arg4: memref<32x768xbf16, #tpu.memory_space<vmem>>, %arg5: memref<128x1536xbf16, #tpu.memory_space<vmem>>, %arg6: memref<1x768xf32, #tpu.memory_space<vmem>>, %arg7: memref<1x3072xf32, #tpu.memory_space<vmem>>, %arg8: memref<1x3072xf32, #tpu.memory_space<vmem>>, %arg9: memref<1x3072xf32, #tpu.memory_space<vmem>>, %arg10: memref<2x3x16x256xf32, #tpu.memory_space<vmem>>, %arg11: memref<2x3072xf32, #tpu.memory_space<vmem>>) attributes {dimension_semantics = [#tpu.dimension_semantics<arbitrary>], iteration_bounds = array<i64: 1>, scalar_prefetch = 0 : i64, scratch_operands = 0 : i64, tpu.core_type = #tpu.core_type<tc>, window_params = [{pipeline_mode = #tpu.pipeline_mode<synchronous>, transform_indices = @transform_0, window_bounds = array<i64: 32, 32>}, {pipeline_mode = #tpu.pipeline_mode<synchronous>, transform_indices = @transform_1, window_bounds = array<i64: 8, 128>}, {pipeline_mode = #tpu.pipeline_mode<synchronous>, transform_indices = @transform_2, window_bounds = array<i64: 2, 3072>}, {pipeline_mode = #tpu.pipeline_mode<synchronous>, transform_indices = @transform_3, window_bounds = array<i64: 32, 768>}, {pipeline_mode = #tpu.pipeline_mode<synchronous>, transform_indices = @transform_4, window_bounds = array<i64: 128, 1536>}, {pipeline_mode = #tpu.pipeline_mode<synchronous>, transform_indices = @transform_5, window_bounds = array<i64: 1, 768>}, {pipeline_mode = #tpu.pipeline_mode<synchronous>, transform_indices = @transform_6, window_bounds = array<i64: 1, 3072>}, {pipeline_mode = #tpu.pipeline_mode<synchronous>, transform_indices = @transform_7, window_bounds = array<i64: 1, 3072>}, {pipeline_mode = #tpu.pipeline_mode<synchronous>, transform_indices = @transform_8, window_bounds = array<i64: 1, 3072>}, {pipeline_mode = #tpu.pipeline_mode<synchronous>, transform_indices = @transform_9, window_bounds = array<i64: 2, 3, 16, 256>}, {pipeline_mode = #tpu.pipeline_mode<synchronous>, transform_indices = @transform_10, window_bounds = array<i64: 2, 3072>}]} {
    %c0 = arith.constant 0 : index
    %c0_0 = arith.constant 0 : index
    %0 = vector.load %arg1[%c0, %c0_0] : memref<32x32xbf16, #tpu.memory_space<vmem>>, vector<32x32xbf16>
    %c0_1 = arith.constant 0 : index
    %c0_2 = arith.constant 0 : index
    %1 = vector.load %arg4[%c0_1, %c0_2] : memref<32x768xbf16, #tpu.memory_space<vmem>>, vector<32x768xbf16>
    %cst = arith.constant dense<0.000000e+00> : vector<32x768xf32>
    %2 = tpu.matmul %0, %1, %cst {dimension_numbers = #tpu.dot_dimension_numbers<[1], [0], [0], [1], [0, 0, 1, 1], [], []>} : vector<32x32xbf16>, vector<32x768xbf16>, vector<32x768xf32> -> vector<32x768xf32>
    %c0_3 = arith.constant 0 : index
    %c0_4 = arith.constant 0 : index
    %3 = vector.load %arg6[%c0_3, %c0_4] : memref<1x768xf32, #tpu.memory_space<vmem>>, vector<1x768xf32>
    %4 = vector.broadcast %3 : vector<1x768xf32> to vector<32x768xf32>
    %5 = arith.addf %2, %4 : vector<32x768xf32>
    %6 = vector.extract_strided_slice %5 {offsets = [0, 0], sizes = [16, 256], strides = [1, 1]} : vector<32x768xf32> to vector<16x256xf32>
    %c0_5 = arith.constant 0 : index
    %c0_6 = arith.constant 0 : index
    %c0_7 = arith.constant 0 : index
    %c0_8 = arith.constant 0 : index
    %7 = vector.load %arg10[%c0_5, %c0_6, %c0_7, %c0_8] : memref<2x3x16x256xf32, #tpu.memory_space<vmem>>, vector<1x1x16x256xf32>
    %8 = vector.shape_cast %7 : vector<1x1x16x256xf32> to vector<16x256xf32>
    %9 = vector.shape_cast %6 : vector<16x256xf32> to vector<1x1x16x256xf32>
    tpu.vector_store %arg10[%c0_5, %c0_6, %c0_7, %c0_8], %9 {strides = array<i32>} : memref<2x3x16x256xf32, #tpu.memory_space<vmem>>, vector<1x1x16x256xf32>,
    %10 = vector.extract_strided_slice %5 {offsets = [0, 256], sizes = [16, 256], strides = [1, 1]} : vector<32x768xf32> to vector<16x256xf32>
    %c0_9 = arith.constant 0 : index
    %c1 = arith.constant 1 : index
    %c0_10 = arith.constant 0 : index
    %c0_11 = arith.constant 0 : index
    %11 = vector.load %arg10[%c0_9, %c1, %c0_10, %c0_11] : memref<2x3x16x256xf32, #tpu.memory_space<vmem>>, vector<1x1x16x256xf32>
    %12 = vector.shape_cast %11 : vector<1x1x16x256xf32> to vector<16x256xf32>
    %13 = vector.shape_cast %10 : vector<16x256xf32> to vector<1x1x16x256xf32>
    tpu.vector_store %arg10[%c0_9, %c1, %c0_10, %c0_11], %13 {strides = array<i32>} : memref<2x3x16x256xf32, #tpu.memory_space<vmem>>, vector<1x1x16x256xf32>,
    %14 = vector.extract_strided_slice %5 {offsets = [0, 512], sizes = [16, 256], strides = [1, 1]} : vector<32x768xf32> to vector<16x256xf32>
    %c0_12 = arith.constant 0 : index
    %c2 = arith.constant 2 : index
    %c0_13 = arith.constant 0 : index
    %c0_14 = arith.constant 0 : index
    %15 = vector.load %arg10[%c0_12, %c2, %c0_13, %c0_14] : memref<2x3x16x256xf32, #tpu.memory_space<vmem>>, vector<1x1x16x256xf32>
    %16 = vector.shape_cast %15 : vector<1x1x16x256xf32> to vector<16x256xf32>
    %17 = vector.shape_cast %14 : vector<16x256xf32> to vector<1x1x16x256xf32>
    tpu.vector_store %arg10[%c0_12, %c2, %c0_13, %c0_14], %17 {strides = array<i32>} : memref<2x3x16x256xf32, #tpu.memory_space<vmem>>, vector<1x1x16x256xf32>,
    %18 = vector.extract_strided_slice %5 {offsets = [16, 0], sizes = [16, 256], strides = [1, 1]} : vector<32x768xf32> to vector<16x256xf32>
    %c1_15 = arith.constant 1 : index
    %c0_16 = arith.constant 0 : index
    %c0_17 = arith.constant 0 : index
    %c0_18 = arith.constant 0 : index
    %19 = vector.load %arg10[%c1_15, %c0_16, %c0_17, %c0_18] : memref<2x3x16x256xf32, #tpu.memory_space<vmem>>, vector<1x1x16x256xf32>
    %20 = vector.shape_cast %19 : vector<1x1x16x256xf32> to vector<16x256xf32>
    %21 = vector.shape_cast %18 : vector<16x256xf32> to vector<1x1x16x256xf32>
    tpu.vector_store %arg10[%c1_15, %c0_16, %c0_17, %c0_18], %21 {strides = array<i32>} : memref<2x3x16x256xf32, #tpu.memory_space<vmem>>, vector<1x1x16x256xf32>,
    %22 = vector.extract_strided_slice %5 {offsets = [16, 256], sizes = [16, 256], strides = [1, 1]} : vector<32x768xf32> to vector<16x256xf32>
    %c1_19 = arith.constant 1 : index
    %c1_20 = arith.constant 1 : index
    %c0_21 = arith.constant 0 : index
    %c0_22 = arith.constant 0 : index
    %23 = vector.load %arg10[%c1_19, %c1_20, %c0_21, %c0_22] : memref<2x3x16x256xf32, #tpu.memory_space<vmem>>, vector<1x1x16x256xf32>
    %24 = vector.shape_cast %23 : vector<1x1x16x256xf32> to vector<16x256xf32>
    %25 = vector.shape_cast %22 : vector<16x256xf32> to vector<1x1x16x256xf32>
    tpu.vector_store %arg10[%c1_19, %c1_20, %c0_21, %c0_22], %25 {strides = array<i32>} : memref<2x3x16x256xf32, #tpu.memory_space<vmem>>, vector<1x1x16x256xf32>,
    %26 = vector.extract_strided_slice %5 {offsets = [16, 512], sizes = [16, 256], strides = [1, 1]} : vector<32x768xf32> to vector<16x256xf32>
    %c1_23 = arith.constant 1 : index
    %c2_24 = arith.constant 2 : index
    %c0_25 = arith.constant 0 : index
    %c0_26 = arith.constant 0 : index
    %27 = vector.load %arg10[%c1_23, %c2_24, %c0_25, %c0_26] : memref<2x3x16x256xf32, #tpu.memory_space<vmem>>, vector<1x1x16x256xf32>
    %28 = vector.shape_cast %27 : vector<1x1x16x256xf32> to vector<16x256xf32>
    %29 = vector.shape_cast %26 : vector<16x256xf32> to vector<1x1x16x256xf32>
    tpu.vector_store %arg10[%c1_23, %c2_24, %c0_25, %c0_26], %29 {strides = array<i32>} : memref<2x3x16x256xf32, #tpu.memory_space<vmem>>, vector<1x1x16x256xf32>,
    %c0_27 = arith.constant 0 : index
    %c0_28 = arith.constant 0 : index
    %30 = vector.load %arg2[%c0_27, %c0_28] : memref<8x128xbf16, #tpu.memory_space<vmem>>, vector<8x128xbf16>
    %c0_29 = arith.constant 0 : index
    %c0_30 = arith.constant 0 : index
    %31 = vector.load %arg5[%c0_29, %c0_30] : memref<128x1536xbf16, #tpu.memory_space<vmem>>, vector<128x1536xbf16>
    %cst_31 = arith.constant dense<0.000000e+00> : vector<8x1536xf32>
    %32 = tpu.matmul %30, %31, %cst_31 {dimension_numbers = #tpu.dot_dimension_numbers<[1], [0], [0], [1], [0, 0, 1, 1], [], []>} : vector<8x128xbf16>, vector<128x1536xbf16>, vector<8x1536xf32> -> vector<8x1536xf32>
    %33 = vector.extract_strided_slice %32 {offsets = [0, 128], sizes = [1, 384], strides = [1, 1]} : vector<8x1536xf32> to vector<1x384xf32>
    %cst_32 = arith.constant 0.000000e+00 : f32
    %34 = vector.broadcast %cst_32 : f32 to vector<1x640xf32>
    %35 = tpu.concatenate %33, %34 in 1 : vector<1x384xf32>, vector<1x640xf32> -> vector<1x1024xf32>
    %36 = vector.extract_strided_slice %32 {offsets = [1, 0], sizes = [1, 512], strides = [1, 1]} : vector<8x1536xf32> to vector<1x512xf32>
    %cst_33 = arith.constant 0.000000e+00 : f32
    %37 = vector.broadcast %cst_33 : f32 to vector<1x128xf32>
    %cst_34 = arith.constant 0.000000e+00 : f32
    %38 = vector.broadcast %cst_34 : f32 to vector<1x384xf32>
    %39 = tpu.concatenate %37, %36, %38 in 1 : vector<1x128xf32>, vector<1x512xf32>, vector<1x384xf32> -> vector<1x1024xf32>
    %40 = arith.addf %35, %39 : vector<1x1024xf32>
    %41 = vector.extract_strided_slice %32 {offsets = [2, 0], sizes = [1, 512], strides = [1, 1]} : vector<8x1536xf32> to vector<1x512xf32>
    %cst_35 = arith.constant 0.000000e+00 : f32
    %42 = vector.broadcast %cst_35 : f32 to vector<1x384xf32>
    %cst_36 = arith.constant 0.000000e+00 : f32
    %43 = vector.broadcast %cst_36 : f32 to vector<1x128xf32>
    %44 = tpu.concatenate %42, %41, %43 in 1 : vector<1x384xf32>, vector<1x512xf32>, vector<1x128xf32> -> vector<1x1024xf32>
    %45 = arith.addf %40, %44 : vector<1x1024xf32>
    %46 = vector.extract_strided_slice %32 {offsets = [3, 0], sizes = [1, 384], strides = [1, 1]} : vector<8x1536xf32> to vector<1x384xf32>
    %cst_37 = arith.constant 0.000000e+00 : f32
    %47 = vector.broadcast %cst_37 : f32 to vector<1x640xf32>
    %48 = tpu.concatenate %47, %46 in 1 : vector<1x640xf32>, vector<1x384xf32> -> vector<1x1024xf32>
    %49 = arith.addf %45, %48 : vector<1x1024xf32>
    %50 = vector.extract_strided_slice %32 {offsets = [0, 640], sizes = [1, 384], strides = [1, 1]} : vector<8x1536xf32> to vector<1x384xf32>
    %cst_38 = arith.constant 0.000000e+00 : f32
    %51 = vector.broadcast %cst_38 : f32 to vector<1x640xf32>
    %52 = tpu.concatenate %50, %51 in 1 : vector<1x384xf32>, vector<1x640xf32> -> vector<1x1024xf32>
    %53 = vector.extract_strided_slice %32 {offsets = [1, 512], sizes = [1, 512], strides = [1, 1]} : vector<8x1536xf32> to vector<1x512xf32>
    %cst_39 = arith.constant 0.000000e+00 : f32
    %54 = vector.broadcast %cst_39 : f32 to vector<1x128xf32>
    %cst_40 = arith.constant 0.000000e+00 : f32
    %55 = vector.broadcast %cst_40 : f32 to vector<1x384xf32>
    %56 = tpu.concatenate %54, %53, %55 in 1 : vector<1x128xf32>, vector<1x512xf32>, vector<1x384xf32> -> vector<1x1024xf32>
    %57 = arith.addf %52, %56 : vector<1x1024xf32>
    %58 = vector.extract_strided_slice %32 {offsets = [2, 512], sizes = [1, 512], strides = [1, 1]} : vector<8x1536xf32> to vector<1x512xf32>
    %cst_41 = arith.constant 0.000000e+00 : f32
    %59 = vector.broadcast %cst_41 : f32 to vector<1x384xf32>
    %cst_42 = arith.constant 0.000000e+00 : f32
    %60 = vector.broadcast %cst_42 : f32 to vector<1x128xf32>
    %61 = tpu.concatenate %59, %58, %60 in 1 : vector<1x384xf32>, vector<1x512xf32>, vector<1x128xf32> -> vector<1x1024xf32>
    %62 = arith.addf %57, %61 : vector<1x1024xf32>
    %63 = vector.extract_strided_slice %32 {offsets = [3, 512], sizes = [1, 384], strides = [1, 1]} : vector<8x1536xf32> to vector<1x384xf32>
    %cst_43 = arith.constant 0.000000e+00 : f32
    %64 = vector.broadcast %cst_43 : f32 to vector<1x640xf32>
    %65 = tpu.concatenate %64, %63 in 1 : vector<1x640xf32>, vector<1x384xf32> -> vector<1x1024xf32>
    %66 = arith.addf %62, %65 : vector<1x1024xf32>
    %67 = vector.extract_strided_slice %32 {offsets = [0, 1152], sizes = [1, 384], strides = [1, 1]} : vector<8x1536xf32> to vector<1x384xf32>
    %cst_44 = arith.constant 0.000000e+00 : f32
    %68 = vector.broadcast %cst_44 : f32 to vector<1x640xf32>
    %69 = tpu.concatenate %67, %68 in 1 : vector<1x384xf32>, vector<1x640xf32> -> vector<1x1024xf32>
    %70 = vector.extract_strided_slice %32 {offsets = [1, 1024], sizes = [1, 512], strides = [1, 1]} : vector<8x1536xf32> to vector<1x512xf32>
    %cst_45 = arith.constant 0.000000e+00 : f32
    %71 = vector.broadcast %cst_45 : f32 to vector<1x128xf32>
    %cst_46 = arith.constant 0.000000e+00 : f32
    %72 = vector.broadcast %cst_46 : f32 to vector<1x384xf32>
    %73 = tpu.concatenate %71, %70, %72 in 1 : vector<1x128xf32>, vector<1x512xf32>, vector<1x384xf32> -> vector<1x1024xf32>
    %74 = arith.addf %69, %73 : vector<1x1024xf32>
    %75 = vector.extract_strided_slice %32 {offsets = [2, 1024], sizes = [1, 512], strides = [1, 1]} : vector<8x1536xf32> to vector<1x512xf32>
    %cst_47 = arith.constant 0.000000e+00 : f32
    %76 = vector.broadcast %cst_47 : f32 to vector<1x384xf32>
    %cst_48 = arith.constant 0.000000e+00 : f32
    %77 = vector.broadcast %cst_48 : f32 to vector<1x128xf32>
    %78 = tpu.concatenate %76, %75, %77 in 1 : vector<1x384xf32>, vector<1x512xf32>, vector<1x128xf32> -> vector<1x1024xf32>
    %79 = arith.addf %74, %78 : vector<1x1024xf32>
    %80 = vector.extract_strided_slice %32 {offsets = [3, 1024], sizes = [1, 384], strides = [1, 1]} : vector<8x1536xf32> to vector<1x384xf32>
    %cst_49 = arith.constant 0.000000e+00 : f32
    %81 = vector.broadcast %cst_49 : f32 to vector<1x640xf32>
    %82 = tpu.concatenate %81, %80 in 1 : vector<1x640xf32>, vector<1x384xf32> -> vector<1x1024xf32>
    %83 = arith.addf %79, %82 : vector<1x1024xf32>
    %84 = tpu.concatenate %49, %66, %83 in 1 : vector<1x1024xf32>, vector<1x1024xf32>, vector<1x1024xf32> -> vector<1x3072xf32>
    %85 = vector.extract_strided_slice %32 {offsets = [4, 128], sizes = [1, 384], strides = [1, 1]} : vector<8x1536xf32> to vector<1x384xf32>
    %cst_50 = arith.constant 0.000000e+00 : f32
    %86 = vector.broadcast %cst_50 : f32 to vector<1x640xf32>
    %87 = tpu.concatenate %85, %86 in 1 : vector<1x384xf32>, vector<1x640xf32> -> vector<1x1024xf32>
    %88 = vector.extract_strided_slice %32 {offsets = [5, 0], sizes = [1, 512], strides = [1, 1]} : vector<8x1536xf32> to vector<1x512xf32>
    %cst_51 = arith.constant 0.000000e+00 : f32
    %89 = vector.broadcast %cst_51 : f32 to vector<1x128xf32>
    %cst_52 = arith.constant 0.000000e+00 : f32
    %90 = vector.broadcast %cst_52 : f32 to vector<1x384xf32>
    %91 = tpu.concatenate %89, %88, %90 in 1 : vector<1x128xf32>, vector<1x512xf32>, vector<1x384xf32> -> vector<1x1024xf32>
    %92 = arith.addf %87, %91 : vector<1x1024xf32>
    %93 = vector.extract_strided_slice %32 {offsets = [6, 0], sizes = [1, 512], strides = [1, 1]} : vector<8x1536xf32> to vector<1x512xf32>
    %cst_53 = arith.constant 0.000000e+00 : f32
    %94 = vector.broadcast %cst_53 : f32 to vector<1x384xf32>
    %cst_54 = arith.constant 0.000000e+00 : f32
    %95 = vector.broadcast %cst_54 : f32 to vector<1x128xf32>
    %96 = tpu.concatenate %94, %93, %95 in 1 : vector<1x384xf32>, vector<1x512xf32>, vector<1x128xf32> -> vector<1x1024xf32>
    %97 = arith.addf %92, %96 : vector<1x1024xf32>
    %98 = vector.extract_strided_slice %32 {offsets = [7, 0], sizes = [1, 384], strides = [1, 1]} : vector<8x1536xf32> to vector<1x384xf32>
    %cst_55 = arith.constant 0.000000e+00 : f32
    %99 = vector.broadcast %cst_55 : f32 to vector<1x640xf32>
    %100 = tpu.concatenate %99, %98 in 1 : vector<1x640xf32>, vector<1x384xf32> -> vector<1x1024xf32>
    %101 = arith.addf %97, %100 : vector<1x1024xf32>
    %102 = vector.extract_strided_slice %32 {offsets = [4, 640], sizes = [1, 384], strides = [1, 1]} : vector<8x1536xf32> to vector<1x384xf32>
    %cst_56 = arith.constant 0.000000e+00 : f32
    %103 = vector.broadcast %cst_56 : f32 to vector<1x640xf32>
    %104 = tpu.concatenate %102, %103 in 1 : vector<1x384xf32>, vector<1x640xf32> -> vector<1x1024xf32>
    %105 = vector.extract_strided_slice %32 {offsets = [5, 512], sizes = [1, 512], strides = [1, 1]} : vector<8x1536xf32> to vector<1x512xf32>
    %cst_57 = arith.constant 0.000000e+00 : f32
    %106 = vector.broadcast %cst_57 : f32 to vector<1x128xf32>
    %cst_58 = arith.constant 0.000000e+00 : f32
    %107 = vector.broadcast %cst_58 : f32 to vector<1x384xf32>
    %108 = tpu.concatenate %106, %105, %107 in 1 : vector<1x128xf32>, vector<1x512xf32>, vector<1x384xf32> -> vector<1x1024xf32>
    %109 = arith.addf %104, %108 : vector<1x1024xf32>
    %110 = vector.extract_strided_slice %32 {offsets = [6, 512], sizes = [1, 512], strides = [1, 1]} : vector<8x1536xf32> to vector<1x512xf32>
    %cst_59 = arith.constant 0.000000e+00 : f32
    %111 = vector.broadcast %cst_59 : f32 to vector<1x384xf32>
    %cst_60 = arith.constant 0.000000e+00 : f32
    %112 = vector.broadcast %cst_60 : f32 to vector<1x128xf32>
    %113 = tpu.concatenate %111, %110, %112 in 1 : vector<1x384xf32>, vector<1x512xf32>, vector<1x128xf32> -> vector<1x1024xf32>
    %114 = arith.addf %109, %113 : vector<1x1024xf32>
    %115 = vector.extract_strided_slice %32 {offsets = [7, 512], sizes = [1, 384], strides = [1, 1]} : vector<8x1536xf32> to vector<1x384xf32>
    %cst_61 = arith.constant 0.000000e+00 : f32
    %116 = vector.broadcast %cst_61 : f32 to vector<1x640xf32>
    %117 = tpu.concatenate %116, %115 in 1 : vector<1x640xf32>, vector<1x384xf32> -> vector<1x1024xf32>
    %118 = arith.addf %114, %117 : vector<1x1024xf32>
    %119 = vector.extract_strided_slice %32 {offsets = [4, 1152], sizes = [1, 384], strides = [1, 1]} : vector<8x1536xf32> to vector<1x384xf32>
    %cst_62 = arith.constant 0.000000e+00 : f32
    %120 = vector.broadcast %cst_62 : f32 to vector<1x640xf32>
    %121 = tpu.concatenate %119, %120 in 1 : vector<1x384xf32>, vector<1x640xf32> -> vector<1x1024xf32>
    %122 = vector.extract_strided_slice %32 {offsets = [5, 1024], sizes = [1, 512], strides = [1, 1]} : vector<8x1536xf32> to vector<1x512xf32>
    %cst_63 = arith.constant 0.000000e+00 : f32
    %123 = vector.broadcast %cst_63 : f32 to vector<1x128xf32>
    %cst_64 = arith.constant 0.000000e+00 : f32
    %124 = vector.broadcast %cst_64 : f32 to vector<1x384xf32>
    %125 = tpu.concatenate %123, %122, %124 in 1 : vector<1x128xf32>, vector<1x512xf32>, vector<1x384xf32> -> vector<1x1024xf32>
    %126 = arith.addf %121, %125 : vector<1x1024xf32>
    %127 = vector.extract_strided_slice %32 {offsets = [6, 1024], sizes = [1, 512], strides = [1, 1]} : vector<8x1536xf32> to vector<1x512xf32>
    %cst_65 = arith.constant 0.000000e+00 : f32
    %128 = vector.broadcast %cst_65 : f32 to vector<1x384xf32>
    %cst_66 = arith.constant 0.000000e+00 : f32
    %129 = vector.broadcast %cst_66 : f32 to vector<1x128xf32>
    %130 = tpu.concatenate %128, %127, %129 in 1 : vector<1x384xf32>, vector<1x512xf32>, vector<1x128xf32> -> vector<1x1024xf32>
    %131 = arith.addf %126, %130 : vector<1x1024xf32>
    %132 = vector.extract_strided_slice %32 {offsets = [7, 1024], sizes = [1, 384], strides = [1, 1]} : vector<8x1536xf32> to vector<1x384xf32>
    %cst_67 = arith.constant 0.000000e+00 : f32
    %133 = vector.broadcast %cst_67 : f32 to vector<1x640xf32>
    %134 = tpu.concatenate %133, %132 in 1 : vector<1x640xf32>, vector<1x384xf32> -> vector<1x1024xf32>
    %135 = arith.addf %131, %134 : vector<1x1024xf32>
    %136 = tpu.concatenate %101, %118, %135 in 1 : vector<1x1024xf32>, vector<1x1024xf32>, vector<1x1024xf32> -> vector<1x3072xf32>
    %137 = tpu.concatenate %84, %136 in 0 : vector<1x3072xf32>, vector<1x3072xf32> -> vector<2x3072xf32>
    %c0_68 = arith.constant 0 : index
    %c0_69 = arith.constant 0 : index
    %138 = vector.load %arg7[%c0_68, %c0_69] : memref<1x3072xf32, #tpu.memory_space<vmem>>, vector<1x3072xf32>
    %139 = vector.broadcast %138 : vector<1x3072xf32> to vector<2x3072xf32>
    %140 = arith.mulf %137, %139 : vector<2x3072xf32>
    %c0_70 = arith.constant 0 : index
    %c0_71 = arith.constant 0 : index
    %141 = vector.load %arg8[%c0_70, %c0_71] : memref<1x3072xf32, #tpu.memory_space<vmem>>, vector<1x3072xf32>
    %142 = vector.broadcast %141 : vector<1x3072xf32> to vector<2x3072xf32>
    %143 = arith.addf %140, %142 : vector<2x3072xf32>
    %c0_72 = arith.constant 0 : index
    %c0_73 = arith.constant 0 : index
    %144 = vector.load %arg3[%c0_72, %c0_73] : memref<2x3072xf32, #tpu.memory_space<vmem>>, vector<2x3072xf32>
    %c0_74 = arith.constant 0 : index
    %c0_75 = arith.constant 0 : index
    %145 = vector.load %arg9[%c0_74, %c0_75] : memref<1x3072xf32, #tpu.memory_space<vmem>>, vector<1x3072xf32>
    %146 = vector.broadcast %145 : vector<1x3072xf32> to vector<2x3072xf32>
    %147 = arith.mulf %144, %146 : vector<2x3072xf32>
    %148 = arith.addf %143, %147 : vector<2x3072xf32>
    %c0_76 = arith.constant 0 : index
    %c0_77 = arith.constant 0 : index
    %149 = vector.load %arg11[%c0_76, %c0_77] : memref<2x3072xf32, #tpu.memory_space<vmem>>, vector<2x3072xf32>
    tpu.vector_store %arg11[%c0_76, %c0_77], %148 {strides = array<i32>} : memref<2x3072xf32, #tpu.memory_space<vmem>>, vector<2x3072xf32>,
    return
  }
  func.func @transform_0(%arg0: i32) -> (i32, i32) {
    %c0_i32 = arith.constant 0 : i32
    %c0_i32_0 = arith.constant 0 : i32
    %c0_i32_1 = arith.constant 0 : i32
    return %c0_i32, %c0_i32_0 : i32, i32
  }
  func.func @transform_1(%arg0: i32) -> (i32, i32) {
    %c0_i32 = arith.constant 0 : i32
    %c0_i32_0 = arith.constant 0 : i32
    %c0_i32_1 = arith.constant 0 : i32
    return %c0_i32, %c0_i32_0 : i32, i32
  }
  func.func @transform_2(%arg0: i32) -> (i32, i32) {
    %c0_i32 = arith.constant 0 : i32
    %c0_i32_0 = arith.constant 0 : i32
    %c0_i32_1 = arith.constant 0 : i32
    return %c0_i32, %c0_i32_0 : i32, i32
  }
  func.func @transform_3(%arg0: i32) -> (i32, i32) {
    %c0_i32 = arith.constant 0 : i32
    %c0_i32_0 = arith.constant 0 : i32
    %c0_i32_1 = arith.constant 0 : i32
    return %c0_i32, %c0_i32_0 : i32, i32
  }
  func.func @transform_4(%arg0: i32) -> (i32, i32) {
    %c0_i32 = arith.constant 0 : i32
    %c0_i32_0 = arith.constant 0 : i32
    %c0_i32_1 = arith.constant 0 : i32
    return %c0_i32, %c0_i32_0 : i32, i32
  }
  func.func @transform_5(%arg0: i32) -> (i32, i32) {
    %c0_i32 = arith.constant 0 : i32
    %c0_i32_0 = arith.constant 0 : i32
    %c0_i32_1 = arith.constant 0 : i32
    return %c0_i32, %c0_i32_0 : i32, i32
  }
  func.func @transform_6(%arg0: i32) -> (i32, i32) {
    %c0_i32 = arith.constant 0 : i32
    %c0_i32_0 = arith.constant 0 : i32
    %c0_i32_1 = arith.constant 0 : i32
    return %c0_i32, %c0_i32_0 : i32, i32
  }
  func.func @transform_7(%arg0: i32) -> (i32, i32) {
    %c0_i32 = arith.constant 0 : i32
    %c0_i32_0 = arith.constant 0 : i32
    %c0_i32_1 = arith.constant 0 : i32
    return %c0_i32, %c0_i32_0 : i32, i32
  }
  func.func @transform_8(%arg0: i32) -> (i32, i32) {
    %c0_i32 = arith.constant 0 : i32
    %c0_i32_0 = arith.constant 0 : i32
    %c0_i32_1 = arith.constant 0 : i32
    return %c0_i32, %c0_i32_0 : i32, i32
  }
  func.func @transform_9(%arg0: i32) -> (i32, i32, i32, i32) {
    %c0_i32 = arith.constant 0 : i32
    %c0_i32_0 = arith.constant 0 : i32
    %c0_i32_1 = arith.constant 0 : i32
    %c0_i32_2 = arith.constant 0 : i32
    %c0_i32_3 = arith.constant 0 : i32
    return %c0_i32, %c0_i32_0, %c0_i32_1, %c0_i32_2 : i32, i32, i32, i32
  }
  func.func @transform_10(%arg0: i32) -> (i32, i32) {
    %c0_i32 = arith.constant 0 : i32
    %c0_i32_0 = arith.constant 0 : i32
    %c0_i32_1 = arith.constant 0 : i32
    return %c0_i32, %c0_i32_0 : i32, i32
  }
}

</mosaic_0001>

<llo_original>
// kernel: patch_smoothing_forward.1
$region0: #{patch_smoothing_forward.1}
  #allocation0 [shape = 'u32[]', space=smem, size = 0x4, offset = 0x4, fixed_abs, tag = 'smem constant byte address 0x4 - core index']
  #allocation1 [shape = 'u32[144,128]{1,0:T(1,128)}', space=vmem, size = 0x12000, scoped, tag = 'internal scratch']
  %s0 = inlined_call_operand.vmem [shape: bf16[32,32], index: 0, kind: input, shape index: {}]
  %s1 = inlined_call_operand.vmem [shape: bf16[8,128], index: 1, kind: input, shape index: {}]
  %s2 = inlined_call_operand.vmem [shape: f32[2,3072], index: 2, kind: input, shape index: {}]
  %s3 = inlined_call_operand.vmem [shape: bf16[32,768], index: 3, kind: input, shape index: {}]
  %s4 = inlined_call_operand.hbm [shape: bf16[128,1536], index: 4, kind: input, shape index: {}]
  %s5 = inlined_call_operand.vmem [shape: f32[1,768], index: 5, kind: input, shape index: {}]
  %s6 = inlined_call_operand.vmem [shape: f32[1,3072], index: 6, kind: input, shape index: {}]
  %s7 = inlined_call_operand.vmem [shape: f32[1,3072], index: 7, kind: input, shape index: {}]
  %s8 = inlined_call_operand.vmem [shape: f32[1,3072], index: 8, kind: input, shape index: {}]
  %s9 = inlined_call_operand.vmem [shape: f32[2,3,16,256], index: 9, kind: output, shape index: {0}]
  %s10 = inlined_call_operand.vmem [shape: f32[2,3072], index: 10, kind: output, shape index: {1}]
  %11 = xla_tuple %s9, %s10
  %s12 = sld [smem:[#allocation0]]
  $region58: #{patch_smoothing_forward.1} parent=0
    _
  %s14 = ssub.s32 1, %s12
  %s15 = scalar_select 0, %s14, %s12
  $region1: #{patch_smoothing_forward.1} parent=0
    #allocation2 [shape = 'u8[393216]{0}', space=vmem, size = 0x60000, scoped, tag = 'input window, operand 4, single buffered']
    #allocation3 [shape = 's32[1]{0}', space=sflag, size = 0x4, scoped, tag = 'scoped memory for patch_smoothing_forward.1']
    %16 = vsyncpa [#allocation3], 0
    // Predicated region
    $region2: #{patch_smoothing_forward.1} parent=1 // pred_check
      _
    $region3: #{patch_smoothing_forward.1} parent=1 // pred_check_branch
      %18 = sbr.rel (0) target = $region5
    $region4: #{patch_smoothing_forward.1} parent=1 // pred_region
      _
    $region5: #{patch_smoothing_forward.1} parent=1 // pred_fallthru
      _
    // Predicated region
    $region6: #{patch_smoothing_forward.1} parent=1 // pred_check
      _
    $region7: #{patch_smoothing_forward.1} parent=1 // pred_check_branch
      %20 = sbr.rel (0) target = $region9
    $region8: #{patch_smoothing_forward.1} parent=1 // pred_region
      _
    $region9: #{patch_smoothing_forward.1} parent=1 // pred_fallthru
      _
    // Predicated region
    $region10: #{patch_smoothing_forward.1} parent=1 // pred_check
      _
    $region11: #{patch_smoothing_forward.1} parent=1 // pred_check_branch
      %22 = sbr.rel (0) target = $region13
    $region12: #{patch_smoothing_forward.1} parent=1 // pred_region
      _
    $region13: #{patch_smoothing_forward.1} parent=1 // pred_fallthru
      _
    // Predicated region
    $region14: #{patch_smoothing_forward.1} parent=1 // pred_check
      _
    $region15: #{patch_smoothing_forward.1} parent=1 // pred_check_branch
      %24 = sbr.rel (0) target = $region17
    $region16: #{patch_smoothing_forward.1} parent=1 // pred_region
      _
    $region17: #{patch_smoothing_forward.1} parent=1 // pred_fallthru
      _
    // Predicated region
    $region18: #{patch_smoothing_forward.1} parent=1 // pred_check
      _
    $region19: #{patch_smoothing_forward.1} parent=1 // pred_check_branch
      %26 = sbr.rel (0) target = $region21
    $region20: #{patch_smoothing_forward.1} parent=1 // pred_region
      %s28 = ssub.s32 12288, 12288
      %29 = vsyncadd [#allocation3], %s28
      %s30 = sshll.u32 [#allocation2], 4
      %s31 = int_to_ptr.vmem [resolvable:$true] %s30
      %36 = dma.hbm_to_vmem [thread:$0]  %s4, 12288, %s31, [#allocation3], 768, 768, 48
    $region21: #{patch_smoothing_forward.1} parent=1 // pred_fallthru
      _
    // Predicated region
    $region22: #{patch_smoothing_forward.1} parent=1 // pred_check
      _
    $region23: #{patch_smoothing_forward.1} parent=1 // pred_check_branch
      %38 = sbr.rel (0) target = $region25
    $region24: #{patch_smoothing_forward.1} parent=1 // pred_region
      _
    $region25: #{patch_smoothing_forward.1} parent=1 // pred_fallthru
      _
    // Predicated region
    $region26: #{patch_smoothing_forward.1} parent=1 // pred_check
      _
    $region27: #{patch_smoothing_forward.1} parent=1 // pred_check_branch
      %40 = sbr.rel (0) target = $region29
    $region28: #{patch_smoothing_forward.1} parent=1 // pred_region
      _
    $region29: #{patch_smoothing_forward.1} parent=1 // pred_fallthru
      _
    // Predicated region
    $region30: #{patch_smoothing_forward.1} parent=1 // pred_check
      _
    $region31: #{patch_smoothing_forward.1} parent=1 // pred_check_branch
      %42 = sbr.rel (0) target = $region33
    $region32: #{patch_smoothing_forward.1} parent=1 // pred_region
      _
    $region33: #{patch_smoothing_forward.1} parent=1 // pred_fallthru
      _
    // Predicated region
    $region34: #{patch_smoothing_forward.1} parent=1 // pred_check
      _
    $region35: #{patch_smoothing_forward.1} parent=1 // pred_check_branch
      %44 = sbr.rel (0) target = $region37
    $region36: #{patch_smoothing_forward.1} parent=1 // pred_region
      _
    $region37: #{patch_smoothing_forward.1} parent=1 // pred_fallthru
      _
    // Predicated region
    $region38: #{patch_smoothing_forward.1} parent=1 // pred_check
      _
    $region39: #{patch_smoothing_forward.1} parent=1 // pred_check_branch
      %46 = sbr.rel (0) target = $region41
    $region40: #{patch_smoothing_forward.1} parent=1 // pred_region
      %47 = dma.done [#allocation3], 12288
    $region41: #{patch_smoothing_forward.1} parent=1 // pred_fallthru
      _
    %v49 = vld [vmem:[%s0] sm:$0xf]
    %v50 = vld [vmem:[%s0 + $0x4] sm:$0xf]
    %v51 = vld [vmem:[%s0 + $0x8] sm:$0xf]
    %v52 = vld [vmem:[%s0 + $0xc] sm:$0xf]
    %v53 = vld [vmem:[%s3] sm:$0xff]
    %v54 = vld [vmem:[%s3 + $0x8] sm:$0xff]
    %v55 = vld [vmem:[%s3 + $0x10] sm:$0xff]
    %v56 = vld [vmem:[%s3 + $0x18] sm:$0xff]
    %v57 = vld [vmem:[%s3 + $0x20] sm:$0xff]
    %v58 = vld [vmem:[%s3 + $0x28] sm:$0xff]
    %v59 = vld [vmem:[%s3 + $0x30] sm:$0xff]
    %v60 = vld [vmem:[%s3 + $0x38] sm:$0xff]
    %v61 = vld [vmem:[%s3 + $0x40] sm:$0xff]
    %v62 = vld [vmem:[%s3 + $0x48] sm:$0xff]
    %v63 = vld [vmem:[%s3 + $0x50] sm:$0xff]
    %v64 = vld [vmem:[%s3 + $0x58] sm:$0xff]
    %v65 = vld [vmem:[%s5] sm:$0x3f]
    %v67 = vlaneseq
    %v68 = vshrl.u32 %v67, 7
    %v69 = vsub.s32 0, %v68
    %v70 = vrot.slane %v65, %v69
    %v71 = vlaneseq
    %v72 = vshrl.u32 %v71, 7
    %v73 = vsub.s32 1, %v72
    %v74 = vrot.slane %v65, %v73
    %v75 = vlaneseq
    %v76 = vshrl.u32 %v75, 7
    %v77 = vsub.s32 2, %v76
    %v78 = vrot.slane %v65, %v77
    %v79 = vlaneseq
    %v80 = vshrl.u32 %v79, 7
    %v81 = vsub.s32 3, %v80
    %v82 = vrot.slane %v65, %v81
    %v83 = vlaneseq
    %v84 = vshrl.u32 %v83, 7
    %v85 = vsub.s32 4, %v84
    %v86 = vrot.slane %v65, %v85
    %v87 = vlaneseq
    %v88 = vshrl.u32 %v87, 7
    %v89 = vsub.s32 5, %v88
    %v90 = vrot.slane %v65, %v89
    %v101 = vunpack.c.l.b16 %v49
    %v102 = vunpack.c.l.b16 %v50
    %v103 = vunpack.c.l.b16 %v51
    %v104 = vunpack.c.l.b16 %v52
    %v105 = vpack.c.b16 %v102, %v101
    %v106 = vpack.c.b16 %v104, %v103
    %v119 = vunpack.c.l.b16 %v53
    %v120 = vunpack.c.h.b16 %v53
    %v121 = vunpack.c.l.b16 %v54
    %v122 = vunpack.c.h.b16 %v54
    %v123 = vunpack.c.l.b16 %v55
    %v124 = vunpack.c.h.b16 %v55
    %v125 = vunpack.c.l.b16 %v56
    %v126 = vunpack.c.h.b16 %v56
    %v127 = vunpack.c.l.b16 %v57
    %v128 = vunpack.c.h.b16 %v57
    %v129 = vunpack.c.l.b16 %v58
    %v130 = vunpack.c.h.b16 %v58
    %v131 = vunpack.c.l.b16 %v59
    %v132 = vunpack.c.h.b16 %v59
    %v133 = vunpack.c.l.b16 %v60
    %v134 = vunpack.c.h.b16 %v60
    %v135 = vunpack.c.l.b16 %v61
    %v136 = vunpack.c.h.b16 %v61
    %v137 = vunpack.c.l.b16 %v62
    %v138 = vunpack.c.h.b16 %v62
    %v139 = vunpack.c.l.b16 %v63
    %v140 = vunpack.c.h.b16 %v63
    %v141 = vunpack.c.l.b16 %v64
    %v142 = vunpack.c.h.b16 %v64
    %v143 = vpack.c.b16 %v125, %v119
    %v144 = vpack.c.b16 %v126, %v120
    %v145 = vpack.c.b16 %v127, %v121
    %v146 = vpack.c.b16 %v128, %v122
    %v147 = vpack.c.b16 %v129, %v123
    %v148 = vpack.c.b16 %v130, %v124
    %v149 = vpack.c.b16 %v137, %v131
    %v150 = vpack.c.b16 %v138, %v132
    %v151 = vpack.c.b16 %v139, %v133
    %v152 = vpack.c.b16 %v140, %v134
    %v153 = vpack.c.b16 %v141, %v135
    %v154 = vpack.c.b16 %v142, %v136
    %vm167 = vcmask 261120
    %v169 = vsel %vm167, %v105, 0
    %v172 = vsel %vm167, %v106, 0
    %174 = vmatprep.subr.bf16.mxu0 %v144
    %175 = vmatpush1.bf16.msra.mxu0 %v143
    %176 = vmatprep.subr.bf16.mxu0 %v150
    %177 = vmatpush1.bf16.msra.mxu0 %v149
    %178 = vmatprep.subr.bf16.mxu0 0
    %179 = vmatpush1.bf16.msra.mxu0 0
    %180 = vmatprep.subr.bf16.mxu0 0
    %181 = vmatpush1.bf16.msra.mxu0 0
    %182 = vmatprep.subr.bf16.mxu0 0
    %183 = vmatpush1.bf16.msra.mxu0 0
    %184 = vmatprep.subr.bf16.mxu0 0
    %185 = vmatpush1.bf16.msra.mxu0 0
    %186 = vmatprep.subr.bf16.mxu0 0
    %187 = vmatpush1.bf16.msra.mxu0 0
    %188 = vmatprep.subr.bf16.mxu0 0
    %189 = vmatpush1.bf16.msra.mxu0 0
    %190 = vmatprep.subr.bf16.mxu0 0
    %191 = vmatpush1.bf16.msra.mxu0 0
    %192 = vmatprep.subr.bf16.mxu0 0
    %193 = vmatpush1.bf16.msra.mxu0 0
    %194 = vmatprep.subr.bf16.mxu0 0
    %195 = vmatpush1.bf16.msra.mxu0 0
    %196 = vmatprep.subr.bf16.mxu0 0
    %197 = vmatpush1.bf16.msra.mxu0 0
    %198 = vmatprep.subr.bf16.mxu0 0
    %199 = vmatpush1.bf16.msra.mxu0 0
    %200 = vmatprep.subr.bf16.mxu0 0
    %201 = vmatpush1.bf16.msra.mxu0 0
    %202 = vmatprep.subr.bf16.mxu0 0
    %203 = vmatpush1.bf16.msra.mxu0 0
    %204 = vmatprep.subr.bf16.mxu0 0
    %205 = vmatpush1.bf16.msra.mxu0 0
    %206 = vmatprep.mubr.bf16.mxu0 0
    %207 = vmatmul.mubr.bf16.gmra.mrb[0].mxu0 %v169
    %v208 = vpop.f32.mrb[0].mxu0
    %v209 = vadd.f32 %v70, %v208
    %v210 = vpop.f32.mrb[0].mxu0
    %v211 = vadd.f32 %v74, %v210
    %v212 = vpop.f32.mrb[0].mxu0
    %v213 = vadd.f32 %v70, %v212
    %v214 = vpop.f32.mrb[0].mxu0
    %v215 = vadd.f32 %v74, %v214
    %216 = vmatprep.mubr.bf16.mxu0 0
    %217 = vmatmul.mubr.bf16.gmra.mrb[0].mxu0 %v172
    %v218 = vpop.f32.mrb[0].mxu0
    %v219 = vadd.f32 %v70, %v218
    %v220 = vpop.f32.mrb[0].mxu0
    %v221 = vadd.f32 %v74, %v220
    %v222 = vpop.f32.mrb[0].mxu0
    %v223 = vadd.f32 %v70, %v222
    %v224 = vpop.f32.mrb[0].mxu0
    %v225 = vadd.f32 %v74, %v224
    %226 = vdwg.mxu0
    %227 = vmatprep.subr.bf16.mxu0 %v146
    %228 = vmatpush1.bf16.msra.mxu0 %v145
    %229 = vmatprep.subr.bf16.mxu0 %v152
    %230 = vmatpush1.bf16.msra.mxu0 %v151
    %231 = vmatprep.subr.bf16.mxu0 0
    %232 = vmatpush1.bf16.msra.mxu0 0
    %233 = vmatprep.subr.bf16.mxu0 0
    %234 = vmatpush1.bf16.msra.mxu0 0
    %235 = vmatprep.subr.bf16.mxu0 0
    %236 = vmatpush1.bf16.msra.mxu0 0
    %237 = vmatprep.subr.bf16.mxu0 0
    %238 = vmatpush1.bf16.msra.mxu0 0
    %239 = vmatprep.subr.bf16.mxu0 0
    %240 = vmatpush1.bf16.msra.mxu0 0
    %241 = vmatprep.subr.bf16.mxu0 0
    %242 = vmatpush1.bf16.msra.mxu0 0
    %243 = vmatprep.subr.bf16.mxu0 0
    %244 = vmatpush1.bf16.msra.mxu0 0
    %245 = vmatprep.subr.bf16.mxu0 0
    %246 = vmatpush1.bf16.msra.mxu0 0
    %247 = vmatprep.subr.bf16.mxu0 0
    %248 = vmatpush1.bf16.msra.mxu0 0
    %249 = vmatprep.subr.bf16.mxu0 0
    %250 = vmatpush1.bf16.msra.mxu0 0
    %251 = vmatprep.subr.bf16.mxu0 0
    %252 = vmatpush1.bf16.msra.mxu0 0
    %253 = vmatprep.subr.bf16.mxu0 0
    %254 = vmatpush1.bf16.msra.mxu0 0
    %255 = vmatprep.subr.bf16.mxu0 0
    %256 = vmatpush1.bf16.msra.mxu0 0
    %257 = vmatprep.subr.bf16.mxu0 0
    %258 = vmatpush1.bf16.msra.mxu0 0
    %259 = vmatprep.mubr.bf16.mxu0 0
    %260 = vmatmul.mubr.bf16.gmra.mrb[0].mxu0 %v169
    %v261 = vpop.f32.mrb[0].mxu0
    %v262 = vadd.f32 %v78, %v261
    %v263 = vpop.f32.mrb[0].mxu0
    %v264 = vadd.f32 %v82, %v263
    %v265 = vpop.f32.mrb[0].mxu0
    %v266 = vadd.f32 %v78, %v265
    %v267 = vpop.f32.mrb[0].mxu0
    %v268 = vadd.f32 %v82, %v267
    %269 = vmatprep.mubr.bf16.mxu0 0
    %270 = vmatmul.mubr.bf16.gmra.mrb[0].mxu0 %v172
    %v271 = vpop.f32.mrb[0].mxu0
    %v272 = vadd.f32 %v78, %v271
    %v273 = vpop.f32.mrb[0].mxu0
    %v274 = vadd.f32 %v82, %v273
    %v275 = vpop.f32.mrb[0].mxu0
    %v276 = vadd.f32 %v78, %v275
    %v277 = vpop.f32.mrb[0].mxu0
    %v278 = vadd.f32 %v82, %v277
    %279 = vdwg.mxu0
    %280 = vmatprep.subr.bf16.mxu0 %v148
    %281 = vmatpush1.bf16.msra.mxu0 %v147
    %282 = vmatprep.subr.bf16.mxu0 %v154
    %283 = vmatpush1.bf16.msra.mxu0 %v153
    %284 = vmatprep.subr.bf16.mxu0 0
    %285 = vmatpush1.bf16.msra.mxu0 0
    %286 = vmatprep.subr.bf16.mxu0 0
    %287 = vmatpush1.bf16.msra.mxu0 0
    %288 = vmatprep.subr.bf16.mxu0 0
    %289 = vmatpush1.bf16.msra.mxu0 0
    %290 = vmatprep.subr.bf16.mxu0 0
    %291 = vmatpush1.bf16.msra.mxu0 0
    %292 = vmatprep.subr.bf16.mxu0 0
    %293 = vmatpush1.bf16.msra.mxu0 0
    %294 = vmatprep.subr.bf16.mxu0 0
    %295 = vmatpush1.bf16.msra.mxu0 0
    %296 = vmatprep.subr.bf16.mxu0 0
    %297 = vmatpush1.bf16.msra.mxu0 0
    %298 = vmatprep.subr.bf16.mxu0 0
    %299 = vmatpush1.bf16.msra.mxu0 0
    %300 = vmatprep.subr.bf16.mxu0 0
    %301 = vmatpush1.bf16.msra.mxu0 0
    %302 = vmatprep.subr.bf16.mxu0 0
    %303 = vmatpush1.bf16.msra.mxu0 0
    %304 = vmatprep.subr.bf16.mxu0 0
    %305 = vmatpush1.bf16.msra.mxu0 0
    %306 = vmatprep.subr.bf16.mxu0 0
    %307 = vmatpush1.bf16.msra.mxu0 0
    %308 = vmatprep.subr.bf16.mxu0 0
    %309 = vmatpush1.bf16.msra.mxu0 0
    %310 = vmatprep.subr.bf16.mxu0 0
    %311 = vmatpush1.bf16.msra.mxu0 0
    %312 = vmatprep.mubr.bf16.mxu0 0
    %313 = vmatmul.mubr.bf16.gmra.mrb[0].mxu0 %v169
    %v314 = vpop.f32.mrb[0].mxu0
    %v315 = vadd.f32 %v86, %v314
    %v316 = vpop.f32.mrb[0].mxu0
    %v317 = vadd.f32 %v90, %v316
    %v318 = vpop.f32.mrb[0].mxu0
    %v319 = vadd.f32 %v86, %v318
    %v320 = vpop.f32.mrb[0].mxu0
    %v321 = vadd.f32 %v90, %v320
    %322 = vmatprep.mubr.bf16.mxu0 0
    %323 = vmatmul.mubr.bf16.gmra.mrb[0].mxu0 %v172
    %v324 = vpop.f32.mrb[0].mxu0
    %v325 = vadd.f32 %v86, %v324
    %v326 = vpop.f32.mrb[0].mxu0
    %v327 = vadd.f32 %v90, %v326
    %v328 = vpop.f32.mrb[0].mxu0
    %v329 = vadd.f32 %v86, %v328
    %v330 = vpop.f32.mrb[0].mxu0
    %v331 = vadd.f32 %v90, %v330
    %332 = vdwg.mxu0
    %333 = vst [vmem:[%s9] sm:$0xff] %v209
    %334 = vst [vmem:[%s9 + $0x8] sm:$0xff] %v211
    %335 = vst [vmem:[%s9 + $0x10] sm:$0xff] %v213
    %336 = vst [vmem:[%s9 + $0x18] sm:$0xff] %v215
    %s337 = scalar_lea.vmem %s9, 32
    %338 = vst [vmem:[%s337] sm:$0xff] %v262
    %339 = vst [vmem:[%s337 + $0x8] sm:$0xff] %v264
    %340 = vst [vmem:[%s337 + $0x10] sm:$0xff] %v266
    %341 = vst [vmem:[%s337 + $0x18] sm:$0xff] %v268
    %s342 = scalar_lea.vmem %s9, 64
    %343 = vst [vmem:[%s342] sm:$0xff] %v315
    %344 = vst [vmem:[%s342 + $0x8] sm:$0xff] %v317
    %345 = vst [vmem:[%s342 + $0x10] sm:$0xff] %v319
    %346 = vst [vmem:[%s342 + $0x18] sm:$0xff] %v321
    %s347 = scalar_lea.vmem %s9, 96
    %348 = vst [vmem:[%s347] sm:$0xff] %v219
    %349 = vst [vmem:[%s347 + $0x8] sm:$0xff] %v221
    %350 = vst [vmem:[%s347 + $0x10] sm:$0xff] %v223
    %351 = vst [vmem:[%s347 + $0x18] sm:$0xff] %v225
    %s352 = scalar_lea.vmem %s9, 128
    %353 = vst [vmem:[%s352] sm:$0xff] %v272
    %354 = vst [vmem:[%s352 + $0x8] sm:$0xff] %v274
    %355 = vst [vmem:[%s352 + $0x10] sm:$0xff] %v276
    %356 = vst [vmem:[%s352 + $0x18] sm:$0xff] %v278
    %s357 = scalar_lea.vmem %s9, 160
    %358 = vst [vmem:[%s357] sm:$0xff] %v325
    %359 = vst [vmem:[%s357 + $0x8] sm:$0xff] %v327
    %360 = vst [vmem:[%s357 + $0x10] sm:$0xff] %v329
    %361 = vst [vmem:[%s357 + $0x18] sm:$0xff] %v331
    %v362 = vld [vmem:[%s1] sm:$0xf]
    %v363 = vld [vmem:[#allocation2] sm:$0xff]
    %v364 = vld [vmem:[#allocation2 + $0x8] sm:$0xff]
    %v365 = vld [vmem:[#allocation2 + $0x10] sm:$0xff]
    %v366 = vld [vmem:[#allocation2 + $0x18] sm:$0xff]
    %v367 = vld [vmem:[#allocation2 + $0x20] sm:$0xff]
    %v368 = vld [vmem:[#allocation2 + $0x28] sm:$0xff]
    %v369 = vld [vmem:[#allocation2 + $0x30] sm:$0xff]
    %v370 = vld [vmem:[#allocation2 + $0x38] sm:$0xff]
    %v371 = vld [vmem:[#allocation2 + $0x40] sm:$0xff]
    %v372 = vld [vmem:[#allocation2 + $0x48] sm:$0xff]
    %v373 = vld [vmem:[#allocation2 + $0x50] sm:$0xff]
    %v374 = vld [vmem:[#allocation2 + $0x58] sm:$0xff]
    %v375 = vld [vmem:[#allocation2 + $0x60] sm:$0xff]
    %v376 = vld [vmem:[#allocation2 + $0x68] sm:$0xff]
    %v377 = vld [vmem:[#allocation2 + $0x70] sm:$0xff]
    %v378 = vld [vmem:[#allocation2 + $0x78] sm:$0xff]
    %v379 = vld [vmem:[#allocation2 + $0x80] sm:$0xff]
    %v380 = vld [vmem:[#allocation2 + $0x88] sm:$0xff]
    %v381 = vld [vmem:[#allocation2 + $0x90] sm:$0xff]
    %v382 = vld [vmem:[#allocation2 + $0x98] sm:$0xff]
    %v383 = vld [vmem:[#allocation2 + $0xa0] sm:$0xff]
    %v384 = vld [vmem:[#allocation2 + $0xa8] sm:$0xff]
    %v385 = vld [vmem:[#allocation2 + $0xb0] sm:$0xff]
    %v386 = vld [vmem:[#allocation2 + $0xb8] sm:$0xff]
    %v387 = vld [vmem:[#allocation2 + $0xc0] sm:$0xff]
    %v388 = vld [vmem:[#allocation2 + $0xc8] sm:$0xff]
    %v389 = vld [vmem:[#allocation2 + $0xd0] sm:$0xff]
    %v390 = vld [vmem:[#allocation2 + $0xd8] sm:$0xff]
    %v391 = vld [vmem:[#allocation2 + $0xe0] sm:$0xff]
    %v392 = vld [vmem:[#allocation2 + $0xe8] sm:$0xff]
    %v393 = vld [vmem:[#allocation2 + $0xf0] sm:$0xff]
    %v394 = vld [vmem:[#allocation2 + $0xf8] sm:$0xff]
    %v395 = vld [vmem:[#allocation2 + $0x100] sm:$0xff]
    %v396 = vld [vmem:[#allocation2 + $0x108] sm:$0xff]
    %v397 = vld [vmem:[#allocation2 + $0x110] sm:$0xff]
    %v398 = vld [vmem:[#allocation2 + $0x118] sm:$0xff]
    %v399 = vld [vmem:[#allocation2 + $0x120] sm:$0xff]
    %v400 = vld [vmem:[#allocation2 + $0x128] sm:$0xff]
    %v401 = vld [vmem:[#allocation2 + $0x130] sm:$0xff]
    %v402 = vld [vmem:[#allocation2 + $0x138] sm:$0xff]
    %v403 = vld [vmem:[#allocation2 + $0x140] sm:$0xff]
    %v404 = vld [vmem:[#allocation2 + $0x148] sm:$0xff]
    %v405 = vld [vmem:[#allocation2 + $0x150] sm:$0xff]
    %v406 = vld [vmem:[#allocation2 + $0x158] sm:$0xff]
    %v407 = vld [vmem:[#allocation2 + $0x160] sm:$0xff]
    %v408 = vld [vmem:[#allocation2 + $0x168] sm:$0xff]
    %v409 = vld [vmem:[#allocation2 + $0x170] sm:$0xff]
    %v410 = vld [vmem:[#allocation2 + $0x178] sm:$0xff]
    %v411 = vld [vmem:[#allocation2 + $0x180] sm:$0xff]
    %v412 = vld [vmem:[#allocation2 + $0x188] sm:$0xff]
    %v413 = vld [vmem:[#allocation2 + $0x190] sm:$0xff]
    %v414 = vld [vmem:[#allocation2 + $0x198] sm:$0xff]
    %v415 = vld [vmem:[#allocation2 + $0x1a0] sm:$0xff]
    %v416 = vld [vmem:[#allocation2 + $0x1a8] sm:$0xff]
    %v417 = vld [vmem:[#allocation2 + $0x1b0] sm:$0xff]
    %v418 = vld [vmem:[#allocation2 + $0x1b8] sm:$0xff]
    %v419 = vld [vmem:[#allocation2 + $0x1c0] sm:$0xff]
    %v420 = vld [vmem:[#allocation2 + $0x1c8] sm:$0xff]
    %v421 = vld [vmem:[#allocation2 + $0x1d0] sm:$0xff]
    %v422 = vld [vmem:[#allocation2 + $0x1d8] sm:$0xff]
    %v423 = vld [vmem:[#allocation2 + $0x1e0] sm:$0xff]
    %v424 = vld [vmem:[#allocation2 + $0x1e8] sm:$0xff]
    %v425 = vld [vmem:[#allocation2 + $0x1f0] sm:$0xff]
    %v426 = vld [vmem:[#allocation2 + $0x1f8] sm:$0xff]
    %v427 = vld [vmem:[#allocation2 + $0x200] sm:$0xff]
    %v428 = vld [vmem:[#allocation2 + $0x208] sm:$0xff]
    %v429 = vld [vmem:[#allocation2 + $0x210] sm:$0xff]
    %v430 = vld [vmem:[#allocation2 + $0x218] sm:$0xff]
    %v431 = vld [vmem:[#allocation2 + $0x220] sm:$0xff]
    %v432 = vld [vmem:[#allocation2 + $0x228] sm:$0xff]
    %v433 = vld [vmem:[#allocation2 + $0x230] sm:$0xff]
    %v434 = vld [vmem:[#allocation2 + $0x238] sm:$0xff]
    %v435 = vld [vmem:[#allocation2 + $0x240] sm:$0xff]
    %v436 = vld [vmem:[#allocation2 + $0x248] sm:$0xff]
    %v437 = vld [vmem:[#allocation2 + $0x250] sm:$0xff]
    %v438 = vld [vmem:[#allocation2 + $0x258] sm:$0xff]
    %v439 = vld [vmem:[#allocation2 + $0x260] sm:$0xff]
    %v440 = vld [vmem:[#allocation2 + $0x268] sm:$0xff]
    %v441 = vld [vmem:[#allocation2 + $0x270] sm:$0xff]
    %v442 = vld [vmem:[#allocation2 + $0x278] sm:$0xff]
    %v443 = vld [vmem:[#allocation2 + $0x280] sm:$0xff]
    %v444 = vld [vmem:[#allocation2 + $0x288] sm:$0xff]
    %v445 = vld [vmem:[#allocation2 + $0x290] sm:$0xff]
    %v446 = vld [vmem:[#allocation2 + $0x298] sm:$0xff]
    %v447 = vld [vmem:[#allocation2 + $0x2a0] sm:$0xff]
    %v448 = vld [vmem:[#allocation2 + $0x2a8] sm:$0xff]
    %v449 = vld [vmem:[#allocation2 + $0x2b0] sm:$0xff]
    %v450 = vld [vmem:[#allocation2 + $0x2b8] sm:$0xff]
    %v451 = vld [vmem:[#allocation2 + $0x2c0] sm:$0xff]
    %v452 = vld [vmem:[#allocation2 + $0x2c8] sm:$0xff]
    %v453 = vld [vmem:[#allocation2 + $0x2d0] sm:$0xff]
    %v454 = vld [vmem:[#allocation2 + $0x2d8] sm:$0xff]
    %v455 = vld [vmem:[#allocation2 + $0x2e0] sm:$0xff]
    %v456 = vld [vmem:[#allocation2 + $0x2e8] sm:$0xff]
    %v457 = vld [vmem:[#allocation2 + $0x2f0] sm:$0xff]
    %v458 = vld [vmem:[#allocation2 + $0x2f8] sm:$0xff]
    %v555 = vunpack.c.l.b16 %v363
    %v556 = vunpack.c.h.b16 %v363
    %v557 = vunpack.c.l.b16 %v364
    %v558 = vunpack.c.h.b16 %v364
    %v559 = vunpack.c.l.b16 %v365
    %v560 = vunpack.c.h.b16 %v365
    %v561 = vunpack.c.l.b16 %v366
    %v562 = vunpack.c.h.b16 %v366
    %v563 = vunpack.c.l.b16 %v367
    %v564 = vunpack.c.h.b16 %v367
    %v565 = vunpack.c.l.b16 %v368
    %v566 = vunpack.c.h.b16 %v368
    %v567 = vunpack.c.l.b16 %v369
    %v568 = vunpack.c.h.b16 %v369
    %v569 = vunpack.c.l.b16 %v370
    %v570 = vunpack.c.h.b16 %v370
    %v571 = vunpack.c.l.b16 %v371
    %v572 = vunpack.c.h.b16 %v371
    %v573 = vunpack.c.l.b16 %v372
    %v574 = vunpack.c.h.b16 %v372
    %v575 = vunpack.c.l.b16 %v373
    %v576 = vunpack.c.h.b16 %v373
    %v577 = vunpack.c.l.b16 %v374
    %v578 = vunpack.c.h.b16 %v374
    %v579 = vunpack.c.l.b16 %v375
    %v580 = vunpack.c.h.b16 %v375
    %v581 = vunpack.c.l.b16 %v376
    %v582 = vunpack.c.h.b16 %v376
    %v583 = vunpack.c.l.b16 %v377
    %v584 = vunpack.c.h.b16 %v377
    %v585 = vunpack.c.l.b16 %v378
    %v586 = vunpack.c.h.b16 %v378
    %v587 = vunpack.c.l.b16 %v379
    %v588 = vunpack.c.h.b16 %v379
    %v589 = vunpack.c.l.b16 %v380
    %v590 = vunpack.c.h.b16 %v380
    %v591 = vunpack.c.l.b16 %v381
    %v592 = vunpack.c.h.b16 %v381
    %v593 = vunpack.c.l.b16 %v382
    %v594 = vunpack.c.h.b16 %v382
    %v595 = vunpack.c.l.b16 %v383
    %v596 = vunpack.c.h.b16 %v383
    %v597 = vunpack.c.l.b16 %v384
    %v598 = vunpack.c.h.b16 %v384
    %v599 = vunpack.c.l.b16 %v385
    %v600 = vunpack.c.h.b16 %v385
    %v601 = vunpack.c.l.b16 %v386
    %v602 = vunpack.c.h.b16 %v386
    %v603 = vunpack.c.l.b16 %v387
    %v604 = vunpack.c.h.b16 %v387
    %v605 = vunpack.c.l.b16 %v388
    %v606 = vunpack.c.h.b16 %v388
    %v607 = vunpack.c.l.b16 %v389
    %v608 = vunpack.c.h.b16 %v389
    %v609 = vunpack.c.l.b16 %v390
    %v610 = vunpack.c.h.b16 %v390
    %v611 = vunpack.c.l.b16 %v391
    %v612 = vunpack.c.h.b16 %v391
    %v613 = vunpack.c.l.b16 %v392
    %v614 = vunpack.c.h.b16 %v392
    %v615 = vunpack.c.l.b16 %v393
    %v616 = vunpack.c.h.b16 %v393
    %v617 = vunpack.c.l.b16 %v394
    %v618 = vunpack.c.h.b16 %v394
    %v619 = vunpack.c.l.b16 %v395
    %v620 = vunpack.c.h.b16 %v395
    %v621 = vunpack.c.l.b16 %v396
    %v622 = vunpack.c.h.b16 %v396
    %v623 = vunpack.c.l.b16 %v397
    %v624 = vunpack.c.h.b16 %v397
    %v625 = vunpack.c.l.b16 %v398
    %v626 = vunpack.c.h.b16 %v398
    %v627 = vunpack.c.l.b16 %v399
    %v628 = vunpack.c.h.b16 %v399
    %v629 = vunpack.c.l.b16 %v400
    %v630 = vunpack.c.h.b16 %v400
    %v631 = vunpack.c.l.b16 %v401
    %v632 = vunpack.c.h.b16 %v401
    %v633 = vunpack.c.l.b16 %v402
    %v634 = vunpack.c.h.b16 %v402
    %v635 = vunpack.c.l.b16 %v403
    %v636 = vunpack.c.h.b16 %v403
    %v637 = vunpack.c.l.b16 %v404
    %v638 = vunpack.c.h.b16 %v404
    %v639 = vunpack.c.l.b16 %v405
    %v640 = vunpack.c.h.b16 %v405
    %v641 = vunpack.c.l.b16 %v406
    %v642 = vunpack.c.h.b16 %v406
    %v643 = vunpack.c.l.b16 %v407
    %v644 = vunpack.c.h.b16 %v407
    %v645 = vunpack.c.l.b16 %v408
    %v646 = vunpack.c.h.b16 %v408
    %v647 = vunpack.c.l.b16 %v409
    %v648 = vunpack.c.h.b16 %v409
    %v649 = vunpack.c.l.b16 %v410
    %v650 = vunpack.c.h.b16 %v410
    %v651 = vunpack.c.l.b16 %v411
    %v652 = vunpack.c.h.b16 %v411
    %v653 = vunpack.c.l.b16 %v412
    %v654 = vunpack.c.h.b16 %v412
    %v655 = vunpack.c.l.b16 %v413
    %v656 = vunpack.c.h.b16 %v413
    %v657 = vunpack.c.l.b16 %v414
    %v658 = vunpack.c.h.b16 %v414
    %v659 = vunpack.c.l.b16 %v415
    %v660 = vunpack.c.h.b16 %v415
    %v661 = vunpack.c.l.b16 %v416
    %v662 = vunpack.c.h.b16 %v416
    %v663 = vunpack.c.l.b16 %v417
    %v664 = vunpack.c.h.b16 %v417
    %v665 = vunpack.c.l.b16 %v418
    %v666 = vunpack.c.h.b16 %v418
    %v667 = vunpack.c.l.b16 %v419
    %v668 = vunpack.c.h.b16 %v419
    %v669 = vunpack.c.l.b16 %v420
    %v670 = vunpack.c.h.b16 %v420
    %v671 = vunpack.c.l.b16 %v421
    %v672 = vunpack.c.h.b16 %v421
    %v673 = vunpack.c.l.b16 %v422
    %v674 = vunpack.c.h.b16 %v422
    %v675 = vunpack.c.l.b16 %v423
    %v676 = vunpack.c.h.b16 %v423
    %v677 = vunpack.c.l.b16 %v424
    %v678 = vunpack.c.h.b16 %v424
    %v679 = vunpack.c.l.b16 %v425
    %v680 = vunpack.c.h.b16 %v425
    %v681 = vunpack.c.l.b16 %v426
    %v682 = vunpack.c.h.b16 %v426
    %v683 = vunpack.c.l.b16 %v427
    %v684 = vunpack.c.h.b16 %v427
    %v685 = vunpack.c.l.b16 %v428
    %v686 = vunpack.c.h.b16 %v428
    %v687 = vunpack.c.l.b16 %v429
    %v688 = vunpack.c.h.b16 %v429
    %v689 = vunpack.c.l.b16 %v430
    %v690 = vunpack.c.h.b16 %v430
    %v691 = vunpack.c.l.b16 %v431
    %v692 = vunpack.c.h.b16 %v431
    %v693 = vunpack.c.l.b16 %v432
    %v694 = vunpack.c.h.b16 %v432
    %v695 = vunpack.c.l.b16 %v433
    %v696 = vunpack.c.h.b16 %v433
    %v697 = vunpack.c.l.b16 %v434
    %v698 = vunpack.c.h.b16 %v434
    %v699 = vunpack.c.l.b16 %v435
    %v700 = vunpack.c.h.b16 %v435
    %v701 = vunpack.c.l.b16 %v436
    %v702 = vunpack.c.h.b16 %v436
    %v703 = vunpack.c.l.b16 %v437
    %v704 = vunpack.c.h.b16 %v437
    %v705 = vunpack.c.l.b16 %v438
    %v706 = vunpack.c.h.b16 %v438
    %v707 = vunpack.c.l.b16 %v439
    %v708 = vunpack.c.h.b16 %v439
    %v709 = vunpack.c.l.b16 %v440
    %v710 = vunpack.c.h.b16 %v440
    %v711 = vunpack.c.l.b16 %v441
    %v712 = vunpack.c.h.b16 %v441
    %v713 = vunpack.c.l.b16 %v442
    %v714 = vunpack.c.h.b16 %v442
    %v715 = vunpack.c.l.b16 %v443
    %v716 = vunpack.c.h.b16 %v443
    %v717 = vunpack.c.l.b16 %v444
    %v718 = vunpack.c.h.b16 %v444
    %v719 = vunpack.c.l.b16 %v445
    %v720 = vunpack.c.h.b16 %v445
    %v721 = vunpack.c.l.b16 %v446
    %v722 = vunpack.c.h.b16 %v446
    %v723 = vunpack.c.l.b16 %v447
    %v724 = vunpack.c.h.b16 %v447
    %v725 = vunpack.c.l.b16 %v448
    %v726 = vunpack.c.h.b16 %v448
    %v727 = vunpack.c.l.b16 %v449
    %v728 = vunpack.c.h.b16 %v449
    %v729 = vunpack.c.l.b16 %v450
    %v730 = vunpack.c.h.b16 %v450
    %v731 = vunpack.c.l.b16 %v451
    %v732 = vunpack.c.h.b16 %v451
    %v733 = vunpack.c.l.b16 %v452
    %v734 = vunpack.c.h.b16 %v452
    %v735 = vunpack.c.l.b16 %v453
    %v736 = vunpack.c.h.b16 %v453
    %v737 = vunpack.c.l.b16 %v454
    %v738 = vunpack.c.h.b16 %v454
    %v739 = vunpack.c.l.b16 %v455
    %v740 = vunpack.c.h.b16 %v455
    %v741 = vunpack.c.l.b16 %v456
    %v742 = vunpack.c.h.b16 %v456
    %v743 = vunpack.c.l.b16 %v457
    %v744 = vunpack.c.h.b16 %v457
    %v745 = vunpack.c.l.b16 %v458
    %v746 = vunpack.c.h.b16 %v458
    %v747 = vpack.c.b16 %v567, %v555
    %v748 = vpack.c.b16 %v568, %v556
    %v749 = vpack.c.b16 %v569, %v557
    %v750 = vpack.c.b16 %v570, %v558
    %v751 = vpack.c.b16 %v571, %v559
    %v752 = vpack.c.b16 %v572, %v560
    %v753 = vpack.c.b16 %v573, %v561
    %v754 = vpack.c.b16 %v574, %v562
    %v755 = vpack.c.b16 %v575, %v563
    %v756 = vpack.c.b16 %v576, %v564
    %v757 = vpack.c.b16 %v577, %v565
    %v758 = vpack.c.b16 %v578, %v566
    %v759 = vpack.c.b16 %v591, %v579
    %v760 = vpack.c.b16 %v592, %v580
    %v761 = vpack.c.b16 %v593, %v581
    %v762 = vpack.c.b16 %v594, %v582
    %v763 = vpack.c.b16 %v595, %v583
    %v764 = vpack.c.b16 %v596, %v584
    %v765 = vpack.c.b16 %v597, %v585
    %v766 = vpack.c.b16 %v598, %v586
    %v767 = vpack.c.b16 %v599, %v587
    %v768 = vpack.c.b16 %v600, %v588
    %v769 = vpack.c.b16 %v601, %v589
    %v770 = vpack.c.b16 %v602, %v590
    %v771 = vpack.c.b16 %v615, %v603
    %v772 = vpack.c.b16 %v616, %v604
    %v773 = vpack.c.b16 %v617, %v605
    %v774 = vpack.c.b16 %v618, %v606
    %v775 = vpack.c.b16 %v619, %v607
    %v776 = vpack.c.b16 %v620, %v608
    %v777 = vpack.c.b16 %v621, %v609
    %v778 = vpack.c.b16 %v622, %v610
    %v779 = vpack.c.b16 %v623, %v611
    %v780 = vpack.c.b16 %v624, %v612
    %v781 = vpack.c.b16 %v625, %v613
    %v782 = vpack.c.b16 %v626, %v614
    %v783 = vpack.c.b16 %v639, %v627
    %v784 = vpack.c.b16 %v640, %v628
    %v785 = vpack.c.b16 %v641, %v629
    %v786 = vpack.c.b16 %v642, %v630
    %v787 = vpack.c.b16 %v643, %v631
    %v788 = vpack.c.b16 %v644, %v632
    %v789 = vpack.c.b16 %v645, %v633
    %v790 = vpack.c.b16 %v646, %v634
    %v791 = vpack.c.b16 %v647, %v635
    %v792 = vpack.c.b16 %v648, %v636
    %v793 = vpack.c.b16 %v649, %v637
    %v794 = vpack.c.b16 %v650, %v638
    %v795 = vpack.c.b16 %v663, %v651
    %v796 = vpack.c.b16 %v664, %v652
    %v797 = vpack.c.b16 %v665, %v653
    %v798 = vpack.c.b16 %v666, %v654
    %v799 = vpack.c.b16 %v667, %v655
    %v800 = vpack.c.b16 %v668, %v656
    %v801 = vpack.c.b16 %v669, %v657
    %v802 = vpack.c.b16 %v670, %v658
    %v803 = vpack.c.b16 %v671, %v659
    %v804 = vpack.c.b16 %v672, %v660
    %v805 = vpack.c.b16 %v673, %v661
    %v806 = vpack.c.b16 %v674, %v662
    %v807 = vpack.c.b16 %v687, %v675
    %v808 = vpack.c.b16 %v688, %v676
    %v809 = vpack.c.b16 %v689, %v677
    %v810 = vpack.c.b16 %v690, %v678
    %v811 = vpack.c.b16 %v691, %v679
    %v812 = vpack.c.b16 %v692, %v680
    %v813 = vpack.c.b16 %v693, %v681
    %v814 = vpack.c.b16 %v694, %v682
    %v815 = vpack.c.b16 %v695, %v683
    %v816 = vpack.c.b16 %v696, %v684
    %v817 = vpack.c.b16 %v697, %v685
    %v818 = vpack.c.b16 %v698, %v686
    %v819 = vpack.c.b16 %v711, %v699
    %v820 = vpack.c.b16 %v712, %v700
    %v821 = vpack.c.b16 %v713, %v701
    %v822 = vpack.c.b16 %v714, %v702
    %v823 = vpack.c.b16 %v715, %v703
    %v824 = vpack.c.b16 %v716, %v704
    %v825 = vpack.c.b16 %v717, %v705
    %v826 = vpack.c.b16 %v718, %v706
    %v827 = vpack.c.b16 %v719, %v707
    %v828 = vpack.c.b16 %v720, %v708
    %v829 = vpack.c.b16 %v721, %v709
    %v830 = vpack.c.b16 %v722, %v710
    %v831 = vpack.c.b16 %v735, %v723
    %v832 = vpack.c.b16 %v736, %v724
    %v833 = vpack.c.b16 %v737, %v725
    %v834 = vpack.c.b16 %v738, %v726
    %v835 = vpack.c.b16 %v739, %v727
    %v836 = vpack.c.b16 %v740, %v728
    %v837 = vpack.c.b16 %v741, %v729
    %v838 = vpack.c.b16 %v742, %v730
    %v839 = vpack.c.b16 %v743, %v731
    %v840 = vpack.c.b16 %v744, %v732
    %v841 = vpack.c.b16 %v745, %v733
    %v842 = vpack.c.b16 %v746, %v734
    %939 = vmatprep.subr.bf16.mxu0 %v748
    %940 = vmatpush1.bf16.msra.mxu0 %v747
    %941 = vmatprep.subr.bf16.mxu0 %v760
    %942 = vmatpush1.bf16.msra.mxu0 %v759
    %943 = vmatprep.subr.bf16.mxu0 %v772
    %944 = vmatpush1.bf16.msra.mxu0 %v771
    %945 = vmatprep.subr.bf16.mxu0 %v784
    %946 = vmatpush1.bf16.msra.mxu0 %v783
    %947 = vmatprep.subr.bf16.mxu0 %v796
    %948 = vmatpush1.bf16.msra.mxu0 %v795
    %949 = vmatprep.subr.bf16.mxu0 %v808
    %950 = vmatpush1.bf16.msra.mxu0 %v807
    %951 = vmatprep.subr.bf16.mxu0 %v820
    %952 = vmatpush1.bf16.msra.mxu0 %v819
    %953 = vmatprep.subr.bf16.mxu0 %v832
    %954 = vmatpush1.bf16.msra.mxu0 %v831
    %955 = vmatprep.subr.bf16.mxu0 0
    %956 = vmatpush1.bf16.msra.mxu0 0
    %957 = vmatprep.subr.bf16.mxu0 0
    %958 = vmatpush1.bf16.msra.mxu0 0
    %959 = vmatprep.subr.bf16.mxu0 0
    %960 = vmatpush1.bf16.msra.mxu0 0
    %961 = vmatprep.subr.bf16.mxu0 0
    %962 = vmatpush1.bf16.msra.mxu0 0
    %963 = vmatprep.subr.bf16.mxu0 0
    %964 = vmatpush1.bf16.msra.mxu0 0
    %965 = vmatprep.subr.bf16.mxu0 0
    %966 = vmatpush1.bf16.msra.mxu0 0
    %967 = vmatprep.subr.bf16.mxu0 0
    %968 = vmatpush1.bf16.msra.mxu0 0
    %969 = vmatprep.subr.bf16.mxu0 0
    %970 = vmatpush1.bf16.msra.mxu0 0
    %971 = vmatprep.mubr.bf16.mxu0 0
    %972 = vmatmul.mubr.bf16.gmra.mrb[0].mxu0 %v362
    %v973 = vpop.f32.mrb[0].mxu0
    %v974 = vadd.f32 0.0, %v973
    %v975 = vpop.f32.mrb[0].mxu0
    %v976 = vadd.f32 0.0, %v975
    %v977 = vpop.f32.mrb[0].mxu0
    %v978 = vpop.f32.mrb[0].mxu0
    %979 = vdwg.mxu0
    %980 = vmatprep.subr.bf16.mxu0 %v750
    %981 = vmatpush1.bf16.msra.mxu0 %v749
    %982 = vmatprep.subr.bf16.mxu0 %v762
    %983 = vmatpush1.bf16.msra.mxu0 %v761
    %984 = vmatprep.subr.bf16.mxu0 %v774
    %985 = vmatpush1.bf16.msra.mxu0 %v773
    %986 = vmatprep.subr.bf16.mxu0 %v786
    %987 = vmatpush1.bf16.msra.mxu0 %v785
    %988 = vmatprep.subr.bf16.mxu0 %v798
    %989 = vmatpush1.bf16.msra.mxu0 %v797
    %990 = vmatprep.subr.bf16.mxu0 %v810
    %991 = vmatpush1.bf16.msra.mxu0 %v809
    %992 = vmatprep.subr.bf16.mxu0 %v822
    %993 = vmatpush1.bf16.msra.mxu0 %v821
    %994 = vmatprep.subr.bf16.mxu0 %v834
    %995 = vmatpush1.bf16.msra.mxu0 %v833
    %996 = vmatprep.subr.bf16.mxu0 0
    %997 = vmatpush1.bf16.msra.mxu0 0
    %998 = vmatprep.subr.bf16.mxu0 0
    %999 = vmatpush1.bf16.msra.mxu0 0
    %1000 = vmatprep.subr.bf16.mxu0 0
    %1001 = vmatpush1.bf16.msra.mxu0 0
    %1002 = vmatprep.subr.bf16.mxu0 0
    %1003 = vmatpush1.bf16.msra.mxu0 0
    %1004 = vmatprep.subr.bf16.mxu0 0
    %1005 = vmatpush1.bf16.msra.mxu0 0
    %1006 = vmatprep.subr.bf16.mxu0 0
    %1007 = vmatpush1.bf16.msra.mxu0 0
    %1008 = vmatprep.subr.bf16.mxu0 0
    %1009 = vmatpush1.bf16.msra.mxu0 0
    %1010 = vmatprep.subr.bf16.mxu0 0
    %1011 = vmatpush1.bf16.msra.mxu0 0
    %1012 = vmatprep.mubr.bf16.mxu0 0
    %1013 = vmatmul.mubr.bf16.gmra.mrb[0].mxu0 %v362
    %v1014 = vpop.f32.mrb[0].mxu0
    %v1015 = vadd.f32 0.0, %v1014
    %v1016 = vpop.f32.mrb[0].mxu0
    %v1017 = vadd.f32 0.0, %v1016
    %v1018 = vpop.f32.mrb[0].mxu0
    %v1019 = vpop.f32.mrb[0].mxu0
    %1020 = vdwg.mxu0
    %1021 = vmatprep.subr.bf16.mxu0 %v752
    %1022 = vmatpush1.bf16.msra.mxu0 %v751
    %1023 = vmatprep.subr.bf16.mxu0 %v764
    %1024 = vmatpush1.bf16.msra.mxu0 %v763
    %1025 = vmatprep.subr.bf16.mxu0 %v776
    %1026 = vmatpush1.bf16.msra.mxu0 %v775
    %1027 = vmatprep.subr.bf16.mxu0 %v788
    %1028 = vmatpush1.bf16.msra.mxu0 %v787
    %1029 = vmatprep.subr.bf16.mxu0 %v800
    %1030 = vmatpush1.bf16.msra.mxu0 %v799
    %1031 = vmatprep.subr.bf16.mxu0 %v812
    %1032 = vmatpush1.bf16.msra.mxu0 %v811
    %1033 = vmatprep.subr.bf16.mxu0 %v824
    %1034 = vmatpush1.bf16.msra.mxu0 %v823
    %1035 = vmatprep.subr.bf16.mxu0 %v836
    %1036 = vmatpush1.bf16.msra.mxu0 %v835
    %1037 = vmatprep.subr.bf16.mxu0 0
    %1038 = vmatpush1.bf16.msra.mxu0 0
    %1039 = vmatprep.subr.bf16.mxu0 0
    %1040 = vmatpush1.bf16.msra.mxu0 0
    %1041 = vmatprep.subr.bf16.mxu0 0
    %1042 = vmatpush1.bf16.msra.mxu0 0
    %1043 = vmatprep.subr.bf16.mxu0 0
    %1044 = vmatpush1.bf16.msra.mxu0 0
    %1045 = vmatprep.subr.bf16.mxu0 0
    %1046 = vmatpush1.bf16.msra.mxu0 0
    %1047 = vmatprep.subr.bf16.mxu0 0
    %1048 = vmatpush1.bf16.msra.mxu0 0
    %1049 = vmatprep.subr.bf16.mxu0 0
    %1050 = vmatpush1.bf16.msra.mxu0 0
    %1051 = vmatprep.subr.bf16.mxu0 0
    %1052 = vmatpush1.bf16.msra.mxu0 0
    %1053 = vmatprep.mubr.bf16.mxu0 0
    %1054 = vmatmul.mubr.bf16.gmra.mrb[0].mxu0 %v362
    %v1055 = vpop.f32.mrb[0].mxu0
    %v1056 = vadd.f32 0.0, %v1055
    %v1057 = vpop.f32.mrb[0].mxu0
    %v1058 = vadd.f32 0.0, %v1057
    %v1059 = vpop.f32.mrb[0].mxu0
    %v1060 = vpop.f32.mrb[0].mxu0
    %1061 = vdwg.mxu0
    %1062 = vmatprep.subr.bf16.mxu0 %v754
    %1063 = vmatpush1.bf16.msra.mxu0 %v753
    %1064 = vmatprep.subr.bf16.mxu0 %v766
    %1065 = vmatpush1.bf16.msra.mxu0 %v765
    %1066 = vmatprep.subr.bf16.mxu0 %v778
    %1067 = vmatpush1.bf16.msra.mxu0 %v777
    %1068 = vmatprep.subr.bf16.mxu0 %v790
    %1069 = vmatpush1.bf16.msra.mxu0 %v789
    %1070 = vmatprep.subr.bf16.mxu0 %v802
    %1071 = vmatpush1.bf16.msra.mxu0 %v801
    %1072 = vmatprep.subr.bf16.mxu0 %v814
    %1073 = vmatpush1.bf16.msra.mxu0 %v813
    %1074 = vmatprep.subr.bf16.mxu0 %v826
    %1075 = vmatpush1.bf16.msra.mxu0 %v825
    %1076 = vmatprep.subr.bf16.mxu0 %v838
    %1077 = vmatpush1.bf16.msra.mxu0 %v837
    %1078 = vmatprep.subr.bf16.mxu0 0
    %1079 = vmatpush1.bf16.msra.mxu0 0
    %1080 = vmatprep.subr.bf16.mxu0 0
    %1081 = vmatpush1.bf16.msra.mxu0 0
    %1082 = vmatprep.subr.bf16.mxu0 0
    %1083 = vmatpush1.bf16.msra.mxu0 0
    %1084 = vmatprep.subr.bf16.mxu0 0
    %1085 = vmatpush1.bf16.msra.mxu0 0
    %1086 = vmatprep.subr.bf16.mxu0 0
    %1087 = vmatpush1.bf16.msra.mxu0 0
    %1088 = vmatprep.subr.bf16.mxu0 0
    %1089 = vmatpush1.bf16.msra.mxu0 0
    %1090 = vmatprep.subr.bf16.mxu0 0
    %1091 = vmatpush1.bf16.msra.mxu0 0
    %1092 = vmatprep.subr.bf16.mxu0 0
    %1093 = vmatpush1.bf16.msra.mxu0 0
    %1094 = vmatprep.mubr.bf16.mxu0 0
    %1095 = vmatmul.mubr.bf16.gmra.mrb[0].mxu0 %v362
    %v1096 = vpop.f32.mrb[0].mxu0
    %v1097 = vadd.f32 0.0, %v1096
    %v1098 = vpop.f32.mrb[0].mxu0
    %v1099 = vadd.f32 0.0, %v1098
    %v1100 = vpop.f32.mrb[0].mxu0
    %v1101 = vpop.f32.mrb[0].mxu0
    %1102 = vdwg.mxu0
    %1103 = vmatprep.subr.bf16.mxu0 %v756
    %1104 = vmatpush1.bf16.msra.mxu0 %v755
    %1105 = vmatprep.subr.bf16.mxu0 %v768
    %1106 = vmatpush1.bf16.msra.mxu0 %v767
    %1107 = vmatprep.subr.bf16.mxu0 %v780
    %1108 = vmatpush1.bf16.msra.mxu0 %v779
    %1109 = vmatprep.subr.bf16.mxu0 %v792
    %1110 = vmatpush1.bf16.msra.mxu0 %v791
    %1111 = vmatprep.subr.bf16.mxu0 %v804
    %1112 = vmatpush1.bf16.msra.mxu0 %v803
    %1113 = vmatprep.subr.bf16.mxu0 %v816
    %1114 = vmatpush1.bf16.msra.mxu0 %v815
    %1115 = vmatprep.subr.bf16.mxu0 %v828
    %1116 = vmatpush1.bf16.msra.mxu0 %v827
    %1117 = vmatprep.subr.bf16.mxu0 %v840
    %1118 = vmatpush1.bf16.msra.mxu0 %v839
    %1119 = vmatprep.subr.bf16.mxu0 0
    %1120 = vmatpush1.bf16.msra.mxu0 0
    %1121 = vmatprep.subr.bf16.mxu0 0
    %1122 = vmatpush1.bf16.msra.mxu0 0
    %1123 = vmatprep.subr.bf16.mxu0 0
    %1124 = vmatpush1.bf16.msra.mxu0 0
    %1125 = vmatprep.subr.bf16.mxu0 0
    %1126 = vmatpush1.bf16.msra.mxu0 0
    %1127 = vmatprep.subr.bf16.mxu0 0
    %1128 = vmatpush1.bf16.msra.mxu0 0
    %1129 = vmatprep.subr.bf16.mxu0 0
    %1130 = vmatpush1.bf16.msra.mxu0 0
    %1131 = vmatprep.subr.bf16.mxu0 0
    %1132 = vmatpush1.bf16.msra.mxu0 0
    %1133 = vmatprep.subr.bf16.mxu0 0
    %1134 = vmatpush1.bf16.msra.mxu0 0
    %1135 = vmatprep.mubr.bf16.mxu0 0
    %1136 = vmatmul.mubr.bf16.gmra.mrb[0].mxu0 %v362
    %v1137 = vpop.f32.mrb[0].mxu0
    %v1138 = vadd.f32 0.0, %v1137
    %v1139 = vpop.f32.mrb[0].mxu0
    %v1140 = vadd.f32 0.0, %v1139
    %v1141 = vpop.f32.mrb[0].mxu0
    %v1142 = vpop.f32.mrb[0].mxu0
    %1143 = vdwg.mxu0
    %1144 = vmatprep.subr.bf16.mxu0 %v758
    %1145 = vmatpush1.bf16.msra.mxu0 %v757
    %1146 = vmatprep.subr.bf16.mxu0 %v770
    %1147 = vmatpush1.bf16.msra.mxu0 %v769
    %1148 = vmatprep.subr.bf16.mxu0 %v782
    %1149 = vmatpush1.bf16.msra.mxu0 %v781
    %1150 = vmatprep.subr.bf16.mxu0 %v794
    %1151 = vmatpush1.bf16.msra.mxu0 %v793
    %1152 = vmatprep.subr.bf16.mxu0 %v806
    %1153 = vmatpush1.bf16.msra.mxu0 %v805
    %1154 = vmatprep.subr.bf16.mxu0 %v818
    %1155 = vmatpush1.bf16.msra.mxu0 %v817
    %1156 = vmatprep.subr.bf16.mxu0 %v830
    %1157 = vmatpush1.bf16.msra.mxu0 %v829
    %1158 = vmatprep.subr.bf16.mxu0 %v842
    %1159 = vmatpush1.bf16.msra.mxu0 %v841
    %1160 = vmatprep.subr.bf16.mxu0 0
    %1161 = vmatpush1.bf16.msra.mxu0 0
    %1162 = vmatprep.subr.bf16.mxu0 0
    %1163 = vmatpush1.bf16.msra.mxu0 0
    %1164 = vmatprep.subr.bf16.mxu0 0
    %1165 = vmatpush1.bf16.msra.mxu0 0
    %1166 = vmatprep.subr.bf16.mxu0 0
    %1167 = vmatpush1.bf16.msra.mxu0 0
    %1168 = vmatprep.subr.bf16.mxu0 0
    %1169 = vmatpush1.bf16.msra.mxu0 0
    %1170 = vmatprep.subr.bf16.mxu0 0
    %1171 = vmatpush1.bf16.msra.mxu0 0
    %1172 = vmatprep.subr.bf16.mxu0 0
    %1173 = vmatpush1.bf16.msra.mxu0 0
    %1174 = vmatprep.subr.bf16.mxu0 0
    %1175 = vmatpush1.bf16.msra.mxu0 0
    %1176 = vmatprep.mubr.bf16.mxu0 0
    %1177 = vmatmul.mubr.bf16.gmra.mrb[0].mxu0 %v362
    %v1178 = vpop.f32.mrb[0].mxu0
    %v1179 = vadd.f32 0.0, %v1178
    %v1180 = vpop.f32.mrb[0].mxu0
    %v1181 = vadd.f32 0.0, %v1180
    %v1182 = vpop.f32.mrb[0].mxu0
    %v1183 = vpop.f32.mrb[0].mxu0
    %1184 = vdwg.mxu0
    %v1189 = vrot.slane %v974, 1
    %v1190 = vrot.slane %v976, 1
    %v1191 = vrot.slane %v1015, 1
    %v1192 = vrot.slane %v1017, 1
    %v1197 = vadd.f32 %v976, 0.0
    %v1198 = vadd.f32 %v1015, %v1189
    %v1199 = vadd.f32 %v1017, %v1190
    %v1200 = vadd.f32 %v1191, 0.0
    %v1201 = vadd.f32 %v1192, 0.0
    %v1202 = vrot.slane %v974, 2
    %v1203 = vrot.slane %v976, 2
    %v1204 = vrot.slane %v1015, 2
    %v1205 = vrot.slane %v1017, 2
    %v1210 = vadd.f32 %v1197, 0.0
    %v1211 = vadd.f32 %v1198, 0.0
    %v1212 = vadd.f32 %v1199, 0.0
    %v1213 = vadd.f32 %v1200, %v1202
    %v1214 = vadd.f32 %v1201, %v1203
    %v1215 = vadd.f32 %v1204, 0.0
    %v1216 = vadd.f32 %v1205, 0.0
    %v1217 = vrot.slane %v974, 3
    %v1218 = vrot.slane %v976, 3
    %v1219 = vrot.slane %v1015, 3
    %v1223 = vadd.f32 %v1210, 0.0
    %v1224 = vadd.f32 %v1211, 0.0
    %v1225 = vadd.f32 %v1212, 0.0
    %v1226 = vadd.f32 %v1213, 0.0
    %v1227 = vadd.f32 %v1214, 0.0
    %v1228 = vadd.f32 %v1215, %v1217
    %v1229 = vadd.f32 %v1216, %v1218
    %v1230 = vadd.f32 %v1219, 0.0
    %v1235 = vrot.slane %v1056, 1
    %v1236 = vrot.slane %v1058, 1
    %v1237 = vrot.slane %v1097, 1
    %v1238 = vrot.slane %v1099, 1
    %v1243 = vadd.f32 %v1058, 0.0
    %v1244 = vadd.f32 %v1097, %v1235
    %v1245 = vadd.f32 %v1099, %v1236
    %v1246 = vadd.f32 %v1237, 0.0
    %v1247 = vadd.f32 %v1238, 0.0
    %v1248 = vrot.slane %v1056, 2
    %v1249 = vrot.slane %v1058, 2
    %v1250 = vrot.slane %v1097, 2
    %v1251 = vrot.slane %v1099, 2
    %v1256 = vadd.f32 %v1243, 0.0
    %v1257 = vadd.f32 %v1244, 0.0
    %v1258 = vadd.f32 %v1245, 0.0
    %v1259 = vadd.f32 %v1246, %v1248
    %v1260 = vadd.f32 %v1247, %v1249
    %v1261 = vadd.f32 %v1250, 0.0
    %v1262 = vadd.f32 %v1251, 0.0
    %v1263 = vrot.slane %v1056, 3
    %v1264 = vrot.slane %v1058, 3
    %v1265 = vrot.slane %v1097, 3
    %v1269 = vadd.f32 %v1256, 0.0
    %v1270 = vadd.f32 %v1257, 0.0
    %v1271 = vadd.f32 %v1258, 0.0
    %v1272 = vadd.f32 %v1259, 0.0
    %v1273 = vadd.f32 %v1260, 0.0
    %v1274 = vadd.f32 %v1261, %v1263
    %v1275 = vadd.f32 %v1262, %v1264
    %v1276 = vadd.f32 %v1265, 0.0
    %v1281 = vrot.slane %v1138, 1
    %v1282 = vrot.slane %v1140, 1
    %v1283 = vrot.slane %v1179, 1
    %v1284 = vrot.slane %v1181, 1
    %v1289 = vadd.f32 %v1140, 0.0
    %v1290 = vadd.f32 %v1179, %v1281
    %v1291 = vadd.f32 %v1181, %v1282
    %v1292 = vadd.f32 %v1283, 0.0
    %v1293 = vadd.f32 %v1284, 0.0
    %v1294 = vrot.slane %v1138, 2
    %v1295 = vrot.slane %v1140, 2
    %v1296 = vrot.slane %v1179, 2
    %v1297 = vrot.slane %v1181, 2
    %v1302 = vadd.f32 %v1289, 0.0
    %v1303 = vadd.f32 %v1290, 0.0
    %v1304 = vadd.f32 %v1291, 0.0
    %v1305 = vadd.f32 %v1292, %v1294
    %v1306 = vadd.f32 %v1293, %v1295
    %v1307 = vadd.f32 %v1296, 0.0
    %v1308 = vadd.f32 %v1297, 0.0
    %v1309 = vrot.slane %v1138, 3
    %v1310 = vrot.slane %v1140, 3
    %v1311 = vrot.slane %v1179, 3
    %v1315 = vadd.f32 %v1302, 0.0
    %v1316 = vadd.f32 %v1303, 0.0
    %v1317 = vadd.f32 %v1304, 0.0
    %v1318 = vadd.f32 %v1305, 0.0
    %v1319 = vadd.f32 %v1306, 0.0
    %v1320 = vadd.f32 %v1307, %v1309
    %v1321 = vadd.f32 %v1308, %v1310
    %v1322 = vadd.f32 %v1311, 0.0
    %v1323 = vrot.slane %v974, 5
    %v1324 = vrot.slane %v976, 5
    %v1325 = vrot.slane %v1015, 5
    %v1326 = vrot.slane %v1017, 5
    %v1328 = vrot.slane 0.0, 4
    %v1329 = vrot.slane %v1323, 4
    %v1330 = vrot.slane %v1324, 4
    %v1331 = vrot.slane %v1325, 4
    %v1332 = vrot.slane %v1326, 4
    %v1338 = vadd.f32 %v976, %v1328
    %v1339 = vadd.f32 %v1015, %v1329
    %v1340 = vadd.f32 %v1017, %v1330
    %v1341 = vadd.f32 %v1331, 0.0
    %v1342 = vadd.f32 %v1332, 0.0
    %v1343 = vadd.f32 %v1328, 0.0
    %v1344 = vrot.slane %v974, 6
    %v1345 = vrot.slane %v976, 6
    %v1346 = vrot.slane %v1015, 6
    %v1347 = vrot.slane %v1017, 6
    %v1348 = vrot.slane %v1344, 4
    %v1349 = vrot.slane %v1345, 4
    %v1350 = vrot.slane %v1346, 4
    %v1351 = vrot.slane %v1347, 4
    %v1356 = vadd.f32 %v1338, %v1328
    %v1357 = vadd.f32 %v1339, %v1328
    %v1358 = vadd.f32 %v1340, %v1328
    %v1359 = vadd.f32 %v1341, %v1348
    %v1360 = vadd.f32 %v1342, %v1349
    %v1361 = vadd.f32 %v1343, %v1350
    %v1362 = vadd.f32 %v1343, %v1351
    %v1363 = vadd.f32 %v1343, %v1328
    %v1364 = vrot.slane %v974, 7
    %v1365 = vrot.slane %v976, 7
    %v1366 = vrot.slane %v1015, 7
    %v1367 = vrot.slane %v1364, 4
    %v1368 = vrot.slane %v1365, 4
    %v1369 = vrot.slane %v1366, 4
    %v1373 = vadd.f32 %v1356, %v1328
    %v1374 = vadd.f32 %v1357, %v1328
    %v1375 = vadd.f32 %v1358, %v1328
    %v1376 = vadd.f32 %v1359, %v1328
    %v1377 = vadd.f32 %v1360, %v1328
    %v1378 = vadd.f32 %v1361, %v1367
    %v1379 = vadd.f32 %v1362, %v1368
    %v1380 = vadd.f32 %v1363, %v1369
    %v1381 = vrot.slane %v1056, 5
    %v1382 = vrot.slane %v1058, 5
    %v1383 = vrot.slane %v1097, 5
    %v1384 = vrot.slane %v1099, 5
    %v1385 = vrot.slane %v1381, 4
    %v1386 = vrot.slane %v1382, 4
    %v1387 = vrot.slane %v1383, 4
    %v1388 = vrot.slane %v1384, 4
    %v1393 = vadd.f32 %v1058, %v1328
    %v1394 = vadd.f32 %v1097, %v1385
    %v1395 = vadd.f32 %v1099, %v1386
    %v1396 = vadd.f32 %v1387, 0.0
    %v1397 = vadd.f32 %v1388, 0.0
    %v1398 = vrot.slane %v1056, 6
    %v1399 = vrot.slane %v1058, 6
    %v1400 = vrot.slane %v1097, 6
    %v1401 = vrot.slane %v1099, 6
    %v1402 = vrot.slane %v1398, 4
    %v1403 = vrot.slane %v1399, 4
    %v1404 = vrot.slane %v1400, 4
    %v1405 = vrot.slane %v1401, 4
    %v1410 = vadd.f32 %v1393, %v1328
    %v1411 = vadd.f32 %v1394, %v1328
    %v1412 = vadd.f32 %v1395, %v1328
    %v1413 = vadd.f32 %v1396, %v1402
    %v1414 = vadd.f32 %v1397, %v1403
    %v1415 = vadd.f32 %v1343, %v1404
    %v1416 = vadd.f32 %v1343, %v1405
    %v1417 = vrot.slane %v1056, 7
    %v1418 = vrot.slane %v1058, 7
    %v1419 = vrot.slane %v1097, 7
    %v1420 = vrot.slane %v1417, 4
    %v1421 = vrot.slane %v1418, 4
    %v1422 = vrot.slane %v1419, 4
    %v1426 = vadd.f32 %v1410, %v1328
    %v1427 = vadd.f32 %v1411, %v1328
    %v1428 = vadd.f32 %v1412, %v1328
    %v1429 = vadd.f32 %v1413, %v1328
    %v1430 = vadd.f32 %v1414, %v1328
    %v1431 = vadd.f32 %v1415, %v1420
    %v1432 = vadd.f32 %v1416, %v1421
    %v1433 = vadd.f32 %v1363, %v1422
    %v1434 = vrot.slane %v1138, 5
    %v1435 = vrot.slane %v1140, 5
    %v1436 = vrot.slane %v1179, 5
    %v1437 = vrot.slane %v1181, 5
    %v1438 = vrot.slane %v1434, 4
    %v1439 = vrot.slane %v1435, 4
    %v1440 = vrot.slane %v1436, 4
    %v1441 = vrot.slane %v1437, 4
    %v1446 = vadd.f32 %v1140, %v1328
    %v1447 = vadd.f32 %v1179, %v1438
    %v1448 = vadd.f32 %v1181, %v1439
    %v1449 = vadd.f32 %v1440, 0.0
    %v1450 = vadd.f32 %v1441, 0.0
    %v1451 = vrot.slane %v1138, 6
    %v1452 = vrot.slane %v1140, 6
    %v1453 = vrot.slane %v1179, 6
    %v1454 = vrot.slane %v1181, 6
    %v1455 = vrot.slane %v1451, 4
    %v1456 = vrot.slane %v1452, 4
    %v1457 = vrot.slane %v1453, 4
    %v1458 = vrot.slane %v1454, 4
    %v1463 = vadd.f32 %v1446, %v1328
    %v1464 = vadd.f32 %v1447, %v1328
    %v1465 = vadd.f32 %v1448, %v1328
    %v1466 = vadd.f32 %v1449, %v1455
    %v1467 = vadd.f32 %v1450, %v1456
    %v1468 = vadd.f32 %v1343, %v1457
    %v1469 = vadd.f32 %v1343, %v1458
    %v1470 = vrot.slane %v1138, 7
    %v1471 = vrot.slane %v1140, 7
    %v1472 = vrot.slane %v1179, 7
    %v1473 = vrot.slane %v1470, 4
    %v1474 = vrot.slane %v1471, 4
    %v1475 = vrot.slane %v1472, 4
    %v1479 = vadd.f32 %v1463, %v1328
    %v1480 = vadd.f32 %v1464, %v1328
    %v1481 = vadd.f32 %v1465, %v1328
    %v1482 = vadd.f32 %v1466, %v1328
    %v1483 = vadd.f32 %v1467, %v1328
    %v1484 = vadd.f32 %v1468, %v1473
    %v1485 = vadd.f32 %v1469, %v1474
    %v1486 = vadd.f32 %v1363, %v1475
    %v1511 = vrot.slane %v1373, 3
    %v1512 = vrot.slane %v1374, 3
    %v1513 = vrot.slane %v1375, 3
    %v1514 = vrot.slane %v1376, 3
    %v1515 = vrot.slane %v1377, 3
    %v1516 = vrot.slane %v1378, 3
    %v1517 = vrot.slane %v1379, 3
    %v1518 = vrot.slane %v1380, 3
    %v1519 = vrot.slane %v1426, 3
    %v1520 = vrot.slane %v1427, 3
    %v1521 = vrot.slane %v1428, 3
    %v1522 = vrot.slane %v1429, 3
    %v1523 = vrot.slane %v1430, 3
    %v1524 = vrot.slane %v1431, 3
    %v1525 = vrot.slane %v1432, 3
    %v1526 = vrot.slane %v1433, 3
    %v1527 = vrot.slane %v1479, 3
    %v1528 = vrot.slane %v1480, 3
    %v1529 = vrot.slane %v1481, 3
    %v1530 = vrot.slane %v1482, 3
    %v1531 = vrot.slane %v1483, 3
    %v1532 = vrot.slane %v1484, 3
    %v1533 = vrot.slane %v1485, 3
    %v1534 = vrot.slane %v1486, 3
    %vm1559 = vcmask 1040384
    %v1560 = vsel %vm1559, %v1223, %v1511
    %v1561 = vsel %vm1559, %v1224, %v1512
    %v1562 = vsel %vm1559, %v1225, %v1513
    %v1563 = vsel %vm1559, %v1226, %v1514
    %v1564 = vsel %vm1559, %v1227, %v1515
    %v1565 = vsel %vm1559, %v1228, %v1516
    %v1566 = vsel %vm1559, %v1229, %v1517
    %v1567 = vsel %vm1559, %v1230, %v1518
    %v1568 = vsel %vm1559, %v1269, %v1519
    %v1569 = vsel %vm1559, %v1270, %v1520
    %v1570 = vsel %vm1559, %v1271, %v1521
    %v1571 = vsel %vm1559, %v1272, %v1522
    %v1572 = vsel %vm1559, %v1273, %v1523
    %v1573 = vsel %vm1559, %v1274, %v1524
    %v1574 = vsel %vm1559, %v1275, %v1525
    %v1575 = vsel %vm1559, %v1276, %v1526
    %v1576 = vsel %vm1559, %v1315, %v1527
    %v1577 = vsel %vm1559, %v1316, %v1528
    %v1578 = vsel %vm1559, %v1317, %v1529
    %v1579 = vsel %vm1559, %v1318, %v1530
    %v1580 = vsel %vm1559, %v1319, %v1531
    %v1581 = vsel %vm1559, %v1320, %v1532
    %v1582 = vsel %vm1559, %v1321, %v1533
    %v1583 = vsel %vm1559, %v1322, %v1534
    %v1584 = vld [vmem:[%s6] sm:$0xff]
    %v1585 = vld [vmem:[%s6 + $0x8] sm:$0xff]
    %v1586 = vld [vmem:[%s6 + $0x10] sm:$0xff]
    %v1590 = vlaneseq
    %v1591 = vshrl.u32 %v1590, 7
    %v1592 = vsub.s32 0, %v1591
    %v1593 = vrot.slane %v1584, %v1592
    %v1594 = vlaneseq
    %v1595 = vshrl.u32 %v1594, 7
    %v1596 = vsub.s32 1, %v1595
    %v1597 = vrot.slane %v1584, %v1596
    %v1598 = vlaneseq
    %v1599 = vshrl.u32 %v1598, 7
    %v1600 = vsub.s32 2, %v1599
    %v1601 = vrot.slane %v1584, %v1600
    %v1602 = vlaneseq
    %v1603 = vshrl.u32 %v1602, 7
    %v1604 = vsub.s32 3, %v1603
    %v1605 = vrot.slane %v1584, %v1604
    %v1606 = vlaneseq
    %v1607 = vshrl.u32 %v1606, 7
    %v1608 = vsub.s32 4, %v1607
    %v1609 = vrot.slane %v1584, %v1608
    %v1610 = vlaneseq
    %v1611 = vshrl.u32 %v1610, 7
    %v1612 = vsub.s32 5, %v1611
    %v1613 = vrot.slane %v1584, %v1612
    %v1614 = vlaneseq
    %v1615 = vshrl.u32 %v1614, 7
    %v1616 = vsub.s32 6, %v1615
    %v1617 = vrot.slane %v1584, %v1616
    %v1618 = vlaneseq
    %v1619 = vshrl.u32 %v1618, 7
    %v1620 = vsub.s32 7, %v1619
    %v1621 = vrot.slane %v1584, %v1620
    %v1622 = vlaneseq
    %v1623 = vshrl.u32 %v1622, 7
    %v1624 = vsub.s32 0, %v1623
    %v1625 = vrot.slane %v1585, %v1624
    %v1626 = vlaneseq
    %v1627 = vshrl.u32 %v1626, 7
    %v1628 = vsub.s32 1, %v1627
    %v1629 = vrot.slane %v1585, %v1628
    %v1630 = vlaneseq
    %v1631 = vshrl.u32 %v1630, 7
    %v1632 = vsub.s32 2, %v1631
    %v1633 = vrot.slane %v1585, %v1632
    %v1634 = vlaneseq
    %v1635 = vshrl.u32 %v1634, 7
    %v1636 = vsub.s32 3, %v1635
    %v1637 = vrot.slane %v1585, %v1636
    %v1638 = vlaneseq
    %v1639 = vshrl.u32 %v1638, 7
    %v1640 = vsub.s32 4, %v1639
    %v1641 = vrot.slane %v1585, %v1640
    %v1642 = vlaneseq
    %v1643 = vshrl.u32 %v1642, 7
    %v1644 = vsub.s32 5, %v1643
    %v1645 = vrot.slane %v1585, %v1644
    %v1646 = vlaneseq
    %v1647 = vshrl.u32 %v1646, 7
    %v1648 = vsub.s32 6, %v1647
    %v1649 = vrot.slane %v1585, %v1648
    %v1650 = vlaneseq
    %v1651 = vshrl.u32 %v1650, 7
    %v1652 = vsub.s32 7, %v1651
    %v1653 = vrot.slane %v1585, %v1652
    %v1654 = vlaneseq
    %v1655 = vshrl.u32 %v1654, 7
    %v1656 = vsub.s32 0, %v1655
    %v1657 = vrot.slane %v1586, %v1656
    %v1658 = vlaneseq
    %v1659 = vshrl.u32 %v1658, 7
    %v1660 = vsub.s32 1, %v1659
    %v1661 = vrot.slane %v1586, %v1660
    %v1662 = vlaneseq
    %v1663 = vshrl.u32 %v1662, 7
    %v1664 = vsub.s32 2, %v1663
    %v1665 = vrot.slane %v1586, %v1664
    %v1666 = vlaneseq
    %v1667 = vshrl.u32 %v1666, 7
    %v1668 = vsub.s32 3, %v1667
    %v1669 = vrot.slane %v1586, %v1668
    %v1670 = vlaneseq
    %v1671 = vshrl.u32 %v1670, 7
    %v1672 = vsub.s32 4, %v1671
    %v1673 = vrot.slane %v1586, %v1672
    %v1674 = vlaneseq
    %v1675 = vshrl.u32 %v1674, 7
    %v1676 = vsub.s32 5, %v1675
    %v1677 = vrot.slane %v1586, %v1676
    %v1678 = vlaneseq
    %v1679 = vshrl.u32 %v1678, 7
    %v1680 = vsub.s32 6, %v1679
    %v1681 = vrot.slane %v1586, %v1680
    %v1682 = vlaneseq
    %v1683 = vshrl.u32 %v1682, 7
    %v1684 = vsub.s32 7, %v1683
    %v1685 = vrot.slane %v1586, %v1684
    %v1710 = vmul.f32 %v1560, %v1593
    %v1711 = vmul.f32 %v1561, %v1597
    %v1712 = vmul.f32 %v1562, %v1601
    %v1713 = vmul.f32 %v1563, %v1605
    %v1714 = vmul.f32 %v1564, %v1609
    %v1715 = vmul.f32 %v1565, %v1613
    %v1716 = vmul.f32 %v1566, %v1617
    %v1717 = vmul.f32 %v1567, %v1621
    %v1718 = vmul.f32 %v1568, %v1625
    %v1719 = vmul.f32 %v1569, %v1629
    %v1720 = vmul.f32 %v1570, %v1633
    %v1721 = vmul.f32 %v1571, %v1637
    %v1722 = vmul.f32 %v1572, %v1641
    %v1723 = vmul.f32 %v1573, %v1645
    %v1724 = vmul.f32 %v1574, %v1649
    %v1725 = vmul.f32 %v1575, %v1653
    %v1726 = vmul.f32 %v1576, %v1657
    %v1727 = vmul.f32 %v1577, %v1661
    %v1728 = vmul.f32 %v1578, %v1665
    %v1729 = vmul.f32 %v1579, %v1669
    %v1730 = vmul.f32 %v1580, %v1673
    %v1731 = vmul.f32 %v1581, %v1677
    %v1732 = vmul.f32 %v1582, %v1681
    %v1733 = vmul.f32 %v1583, %v1685
    %v1734 = vld [vmem:[%s7] sm:$0xff]
    %v1735 = vld [vmem:[%s7 + $0x8] sm:$0xff]
    %v1736 = vld [vmem:[%s7 + $0x10] sm:$0xff]
    %v1740 = vlaneseq
    %v1741 = vshrl.u32 %v1740, 7
    %v1742 = vsub.s32 0, %v1741
    %v1743 = vrot.slane %v1734, %v1742
    %v1744 = vlaneseq
    %v1745 = vshrl.u32 %v1744, 7
    %v1746 = vsub.s32 1, %v1745
    %v1747 = vrot.slane %v1734, %v1746
    %v1748 = vlaneseq
    %v1749 = vshrl.u32 %v1748, 7
    %v1750 = vsub.s32 2, %v1749
    %v1751 = vrot.slane %v1734, %v1750
    %v1752 = vlaneseq
    %v1753 = vshrl.u32 %v1752, 7
    %v1754 = vsub.s32 3, %v1753
    %v1755 = vrot.slane %v1734, %v1754
    %v1756 = vlaneseq
    %v1757 = vshrl.u32 %v1756, 7
    %v1758 = vsub.s32 4, %v1757
    %v1759 = vrot.slane %v1734, %v1758
    %v1760 = vlaneseq
    %v1761 = vshrl.u32 %v1760, 7
    %v1762 = vsub.s32 5, %v1761
    %v1763 = vrot.slane %v1734, %v1762
    %v1764 = vlaneseq
    %v1765 = vshrl.u32 %v1764, 7
    %v1766 = vsub.s32 6, %v1765
    %v1767 = vrot.slane %v1734, %v1766
    %v1768 = vlaneseq
    %v1769 = vshrl.u32 %v1768, 7
    %v1770 = vsub.s32 7, %v1769
    %v1771 = vrot.slane %v1734, %v1770
    %v1772 = vlaneseq
    %v1773 = vshrl.u32 %v1772, 7
    %v1774 = vsub.s32 0, %v1773
    %v1775 = vrot.slane %v1735, %v1774
    %v1776 = vlaneseq
    %v1777 = vshrl.u32 %v1776, 7
    %v1778 = vsub.s32 1, %v1777
    %v1779 = vrot.slane %v1735, %v1778
    %v1780 = vlaneseq
    %v1781 = vshrl.u32 %v1780, 7
    %v1782 = vsub.s32 2, %v1781
    %v1783 = vrot.slane %v1735, %v1782
    %v1784 = vlaneseq
    %v1785 = vshrl.u32 %v1784, 7
    %v1786 = vsub.s32 3, %v1785
    %v1787 = vrot.slane %v1735, %v1786
    %v1788 = vlaneseq
    %v1789 = vshrl.u32 %v1788, 7
    %v1790 = vsub.s32 4, %v1789
    %v1791 = vrot.slane %v1735, %v1790
    %v1792 = vlaneseq
    %v1793 = vshrl.u32 %v1792, 7
    %v1794 = vsub.s32 5, %v1793
    %v1795 = vrot.slane %v1735, %v1794
    %v1796 = vlaneseq
    %v1797 = vshrl.u32 %v1796, 7
    %v1798 = vsub.s32 6, %v1797
    %v1799 = vrot.slane %v1735, %v1798
    %v1800 = vlaneseq
    %v1801 = vshrl.u32 %v1800, 7
    %v1802 = vsub.s32 7, %v1801
    %v1803 = vrot.slane %v1735, %v1802
    %v1804 = vlaneseq
    %v1805 = vshrl.u32 %v1804, 7
    %v1806 = vsub.s32 0, %v1805
    %v1807 = vrot.slane %v1736, %v1806
    %v1808 = vlaneseq
    %v1809 = vshrl.u32 %v1808, 7
    %v1810 = vsub.s32 1, %v1809
    %v1811 = vrot.slane %v1736, %v1810
    %v1812 = vlaneseq
    %v1813 = vshrl.u32 %v1812, 7
    %v1814 = vsub.s32 2, %v1813
    %v1815 = vrot.slane %v1736, %v1814
    %v1816 = vlaneseq
    %v1817 = vshrl.u32 %v1816, 7
    %v1818 = vsub.s32 3, %v1817
    %v1819 = vrot.slane %v1736, %v1818
    %v1820 = vlaneseq
    %v1821 = vshrl.u32 %v1820, 7
    %v1822 = vsub.s32 4, %v1821
    %v1823 = vrot.slane %v1736, %v1822
    %v1824 = vlaneseq
    %v1825 = vshrl.u32 %v1824, 7
    %v1826 = vsub.s32 5, %v1825
    %v1827 = vrot.slane %v1736, %v1826
    %v1828 = vlaneseq
    %v1829 = vshrl.u32 %v1828, 7
    %v1830 = vsub.s32 6, %v1829
    %v1831 = vrot.slane %v1736, %v1830
    %v1832 = vlaneseq
    %v1833 = vshrl.u32 %v1832, 7
    %v1834 = vsub.s32 7, %v1833
    %v1835 = vrot.slane %v1736, %v1834
    %v1860 = vadd.f32 %v1710, %v1743
    %v1861 = vadd.f32 %v1711, %v1747
    %v1862 = vadd.f32 %v1712, %v1751
    %v1863 = vadd.f32 %v1713, %v1755
    %v1864 = vadd.f32 %v1714, %v1759
    %v1865 = vadd.f32 %v1715, %v1763
    %v1866 = vadd.f32 %v1716, %v1767
    %v1867 = vadd.f32 %v1717, %v1771
    %v1868 = vadd.f32 %v1718, %v1775
    %v1869 = vadd.f32 %v1719, %v1779
    %v1870 = vadd.f32 %v1720, %v1783
    %v1871 = vadd.f32 %v1721, %v1787
    %v1872 = vadd.f32 %v1722, %v1791
    %v1873 = vadd.f32 %v1723, %v1795
    %v1874 = vadd.f32 %v1724, %v1799
    %v1875 = vadd.f32 %v1725, %v1803
    %v1876 = vadd.f32 %v1726, %v1807
    %v1877 = vadd.f32 %v1727, %v1811
    %v1878 = vadd.f32 %v1728, %v1815
    %v1879 = vadd.f32 %v1729, %v1819
    %v1880 = vadd.f32 %v1730, %v1823
    %v1881 = vadd.f32 %v1731, %v1827
    %v1882 = vadd.f32 %v1732, %v1831
    %v1883 = vadd.f32 %v1733, %v1835
    %v1884 = vld [vmem:[%s2] sm:$0xff]
    %v1885 = vld [vmem:[%s2 + $0x8] sm:$0xff]
    %v1886 = vld [vmem:[%s2 + $0x10] sm:$0xff]
    %v1887 = vld [vmem:[%s2 + $0x18] sm:$0xff]
    %v1888 = vld [vmem:[%s2 + $0x20] sm:$0xff]
    %v1889 = vld [vmem:[%s2 + $0x28] sm:$0xff]
    %v1890 = vld [vmem:[%s8] sm:$0xff]
    %v1891 = vld [vmem:[%s8 + $0x8] sm:$0xff]
    %v1892 = vld [vmem:[%s8 + $0x10] sm:$0xff]
    %v1896 = vlaneseq
    %v1897 = vshrl.u32 %v1896, 7
    %v1898 = vsub.s32 0, %v1897
    %v1899 = vrot.slane %v1890, %v1898
    %v1900 = vlaneseq
    %v1901 = vshrl.u32 %v1900, 7
    %v1902 = vsub.s32 1, %v1901
    %v1903 = vrot.slane %v1890, %v1902
    %v1904 = vlaneseq
    %v1905 = vshrl.u32 %v1904, 7
    %v1906 = vsub.s32 2, %v1905
    %v1907 = vrot.slane %v1890, %v1906
    %v1908 = vlaneseq
    %v1909 = vshrl.u32 %v1908, 7
    %v1910 = vsub.s32 3, %v1909
    %v1911 = vrot.slane %v1890, %v1910
    %v1912 = vlaneseq
    %v1913 = vshrl.u32 %v1912, 7
    %v1914 = vsub.s32 4, %v1913
    %v1915 = vrot.slane %v1890, %v1914
    %v1916 = vlaneseq
    %v1917 = vshrl.u32 %v1916, 7
    %v1918 = vsub.s32 5, %v1917
    %v1919 = vrot.slane %v1890, %v1918
    %v1920 = vlaneseq
    %v1921 = vshrl.u32 %v1920, 7
    %v1922 = vsub.s32 6, %v1921
    %v1923 = vrot.slane %v1890, %v1922
    %v1924 = vlaneseq
    %v1925 = vshrl.u32 %v1924, 7
    %v1926 = vsub.s32 7, %v1925
    %v1927 = vrot.slane %v1890, %v1926
    %v1928 = vlaneseq
    %v1929 = vshrl.u32 %v1928, 7
    %v1930 = vsub.s32 0, %v1929
    %v1931 = vrot.slane %v1891, %v1930
    %v1932 = vlaneseq
    %v1933 = vshrl.u32 %v1932, 7
    %v1934 = vsub.s32 1, %v1933
    %v1935 = vrot.slane %v1891, %v1934
    %v1936 = vlaneseq
    %v1937 = vshrl.u32 %v1936, 7
    %v1938 = vsub.s32 2, %v1937
    %v1939 = vrot.slane %v1891, %v1938
    %v1940 = vlaneseq
    %v1941 = vshrl.u32 %v1940, 7
    %v1942 = vsub.s32 3, %v1941
    %v1943 = vrot.slane %v1891, %v1942
    %v1944 = vlaneseq
    %v1945 = vshrl.u32 %v1944, 7
    %v1946 = vsub.s32 4, %v1945
    %v1947 = vrot.slane %v1891, %v1946
    %v1948 = vlaneseq
    %v1949 = vshrl.u32 %v1948, 7
    %v1950 = vsub.s32 5, %v1949
    %v1951 = vrot.slane %v1891, %v1950
    %v1952 = vlaneseq
    %v1953 = vshrl.u32 %v1952, 7
    %v1954 = vsub.s32 6, %v1953
    %v1955 = vrot.slane %v1891, %v1954
    %v1956 = vlaneseq
    %v1957 = vshrl.u32 %v1956, 7
    %v1958 = vsub.s32 7, %v1957
    %v1959 = vrot.slane %v1891, %v1958
    %v1960 = vlaneseq
    %v1961 = vshrl.u32 %v1960, 7
    %v1962 = vsub.s32 0, %v1961
    %v1963 = vrot.slane %v1892, %v1962
    %v1964 = vlaneseq
    %v1965 = vshrl.u32 %v1964, 7
    %v1966 = vsub.s32 1, %v1965
    %v1967 = vrot.slane %v1892, %v1966
    %v1968 = vlaneseq
    %v1969 = vshrl.u32 %v1968, 7
    %v1970 = vsub.s32 2, %v1969
    %v1971 = vrot.slane %v1892, %v1970
    %v1972 = vlaneseq
    %v1973 = vshrl.u32 %v1972, 7
    %v1974 = vsub.s32 3, %v1973
    %v1975 = vrot.slane %v1892, %v1974
    %v1976 = vlaneseq
    %v1977 = vshrl.u32 %v1976, 7
    %v1978 = vsub.s32 4, %v1977
    %v1979 = vrot.slane %v1892, %v1978
    %v1980 = vlaneseq
    %v1981 = vshrl.u32 %v1980, 7
    %v1982 = vsub.s32 5, %v1981
    %v1983 = vrot.slane %v1892, %v1982
    %v1984 = vlaneseq
    %v1985 = vshrl.u32 %v1984, 7
    %v1986 = vsub.s32 6, %v1985
    %v1987 = vrot.slane %v1892, %v1986
    %v1988 = vlaneseq
    %v1989 = vshrl.u32 %v1988, 7
    %v1990 = vsub.s32 7, %v1989
    %v1991 = vrot.slane %v1892, %v1990
    %v1992 = vcombine.low %v1899, %v1903
    %v1993 = vcombine.low %v1907, %v1911
    %v1995 = vunpack.c.l.s4 1983009808
    %v1996 = vunpack.c.0.s8 %v1995
    %v1997 = vlaneseq
    %v1998 = vshrl.u32 %v1997, 7
    %v1999 = vsub.s32 %v1996, %v1998
    %v2000 = vrot.slane %v1992, %v1999
    %v2002 = vunpack.c.l.s4 1983009808
    %v2003 = vunpack.c.0.s8 %v2002
    %v2004 = vlaneseq
    %v2005 = vshrl.u32 %v2004, 7
    %v2006 = vsub.s32 %v2003, %v2005
    %v2007 = vrot.slane %v1993, %v2006
    %v2008 = vcombine.low %v2000, %v2007
    %v2009 = vcombine.low %v1915, %v1919
    %v2010 = vcombine.low %v1923, %v1927
    %v2012 = vunpack.c.l.s4 1983009808
    %v2013 = vunpack.c.0.s8 %v2012
    %v2014 = vlaneseq
    %v2015 = vshrl.u32 %v2014, 7
    %v2016 = vsub.s32 %v2013, %v2015
    %v2017 = vrot.slane %v2009, %v2016
    %v2019 = vunpack.c.l.s4 1983009808
    %v2020 = vunpack.c.0.s8 %v2019
    %v2021 = vlaneseq
    %v2022 = vshrl.u32 %v2021, 7
    %v2023 = vsub.s32 %v2020, %v2022
    %v2024 = vrot.slane %v2010, %v2023
    %v2025 = vcombine.low %v2017, %v2024
    %v2026 = vcombine.low %v1931, %v1935
    %v2027 = vcombine.low %v1939, %v1943
    %v2029 = vunpack.c.l.s4 1983009808
    %v2030 = vunpack.c.0.s8 %v2029
    %v2031 = vlaneseq
    %v2032 = vshrl.u32 %v2031, 7
    %v2033 = vsub.s32 %v2030, %v2032
    %v2034 = vrot.slane %v2026, %v2033
    %v2036 = vunpack.c.l.s4 1983009808
    %v2037 = vunpack.c.0.s8 %v2036
    %v2038 = vlaneseq
    %v2039 = vshrl.u32 %v2038, 7
    %v2040 = vsub.s32 %v2037, %v2039
    %v2041 = vrot.slane %v2027, %v2040
    %v2042 = vcombine.low %v2034, %v2041
    %v2043 = vcombine.low %v1947, %v1951
    %v2044 = vcombine.low %v1955, %v1959
    %v2046 = vunpack.c.l.s4 1983009808
    %v2047 = vunpack.c.0.s8 %v2046
    %v2048 = vlaneseq
    %v2049 = vshrl.u32 %v2048, 7
    %v2050 = vsub.s32 %v2047, %v2049
    %v2051 = vrot.slane %v2043, %v2050
    %v2053 = vunpack.c.l.s4 1983009808
    %v2054 = vunpack.c.0.s8 %v2053
    %v2055 = vlaneseq
    %v2056 = vshrl.u32 %v2055, 7
    %v2057 = vsub.s32 %v2054, %v2056
    %v2058 = vrot.slane %v2044, %v2057
    %v2059 = vcombine.low %v2051, %v2058
    %v2060 = vcombine.low %v1963, %v1967
    %v2061 = vcombine.low %v1971, %v1975
    %v2063 = vunpack.c.l.s4 1983009808
    %v2064 = vunpack.c.0.s8 %v2063
    %v2065 = vlaneseq
    %v2066 = vshrl.u32 %v2065, 7
    %v2067 = vsub.s32 %v2064, %v2066
    %v2068 = vrot.slane %v2060, %v2067
    %v2070 = vunpack.c.l.s4 1983009808
    %v2071 = vunpack.c.0.s8 %v2070
    %v2072 = vlaneseq
    %v2073 = vshrl.u32 %v2072, 7
    %v2074 = vsub.s32 %v2071, %v2073
    %v2075 = vrot.slane %v2061, %v2074
    %v2076 = vcombine.low %v2068, %v2075
    %v2077 = vcombine.low %v1979, %v1983
    %v2078 = vcombine.low %v1987, %v1991
    %v2080 = vunpack.c.l.s4 1983009808
    %v2081 = vunpack.c.0.s8 %v2080
    %v2082 = vlaneseq
    %v2083 = vshrl.u32 %v2082, 7
    %v2084 = vsub.s32 %v2081, %v2083
    %v2085 = vrot.slane %v2077, %v2084
    %v2087 = vunpack.c.l.s4 1983009808
    %v2088 = vunpack.c.0.s8 %v2087
    %v2089 = vlaneseq
    %v2090 = vshrl.u32 %v2089, 7
    %v2091 = vsub.s32 %v2088, %v2090
    %v2092 = vrot.slane %v2078, %v2091
    %v2093 = vcombine.low %v2085, %v2092
    %v2100 = vmul.f32 %v1884, %v2008
    %v2101 = vmul.f32 %v1885, %v2025
    %v2102 = vmul.f32 %v1886, %v2042
    %v2103 = vmul.f32 %v1887, %v2059
    %v2104 = vmul.f32 %v1888, %v2076
    %v2105 = vmul.f32 %v1889, %v2093
    %v2112 = vcombine.high %v2100, %v2100
    %v2114 = vunpack.c.l.s4 1983009808
    %v2115 = vunpack.c.0.s8 %v2114
    %v2116 = vlaneseq
    %v2117 = vshrl.u32 %v2116, 7
    %v2118 = vsub.s32 %v2115, %v2117
    %v2119 = vrot.slane %v2100, %v2118
    %v2121 = vunpack.c.l.s4 1983009808
    %v2122 = vunpack.c.0.s8 %v2121
    %v2123 = vlaneseq
    %v2124 = vshrl.u32 %v2123, 7
    %v2125 = vsub.s32 %v2122, %v2124
    %v2126 = vrot.slane %v2112, %v2125
    %v2127 = vcombine.high %v2119, %v2119
    %v2128 = vcombine.high %v2126, %v2126
    %v2129 = vcombine.high %v2101, %v2101
    %v2131 = vunpack.c.l.s4 1983009808
    %v2132 = vunpack.c.0.s8 %v2131
    %v2133 = vlaneseq
    %v2134 = vshrl.u32 %v2133, 7
    %v2135 = vsub.s32 %v2132, %v2134
    %v2136 = vrot.slane %v2101, %v2135
    %v2138 = vunpack.c.l.s4 1983009808
    %v2139 = vunpack.c.0.s8 %v2138
    %v2140 = vlaneseq
    %v2141 = vshrl.u32 %v2140, 7
    %v2142 = vsub.s32 %v2139, %v2141
    %v2143 = vrot.slane %v2129, %v2142
    %v2144 = vcombine.high %v2136, %v2136
    %v2145 = vcombine.high %v2143, %v2143
    %v2146 = vcombine.high %v2102, %v2102
    %v2148 = vunpack.c.l.s4 1983009808
    %v2149 = vunpack.c.0.s8 %v2148
    %v2150 = vlaneseq
    %v2151 = vshrl.u32 %v2150, 7
    %v2152 = vsub.s32 %v2149, %v2151
    %v2153 = vrot.slane %v2102, %v2152
    %v2155 = vunpack.c.l.s4 1983009808
    %v2156 = vunpack.c.0.s8 %v2155
    %v2157 = vlaneseq
    %v2158 = vshrl.u32 %v2157, 7
    %v2159 = vsub.s32 %v2156, %v2158
    %v2160 = vrot.slane %v2146, %v2159
    %v2161 = vcombine.high %v2153, %v2153
    %v2162 = vcombine.high %v2160, %v2160
    %v2163 = vcombine.high %v2103, %v2103
    %v2165 = vunpack.c.l.s4 1983009808
    %v2166 = vunpack.c.0.s8 %v2165
    %v2167 = vlaneseq
    %v2168 = vshrl.u32 %v2167, 7
    %v2169 = vsub.s32 %v2166, %v2168
    %v2170 = vrot.slane %v2103, %v2169
    %v2172 = vunpack.c.l.s4 1983009808
    %v2173 = vunpack.c.0.s8 %v2172
    %v2174 = vlaneseq
    %v2175 = vshrl.u32 %v2174, 7
    %v2176 = vsub.s32 %v2173, %v2175
    %v2177 = vrot.slane %v2163, %v2176
    %v2178 = vcombine.high %v2170, %v2170
    %v2179 = vcombine.high %v2177, %v2177
    %v2180 = vcombine.high %v2104, %v2104
    %v2182 = vunpack.c.l.s4 1983009808
    %v2183 = vunpack.c.0.s8 %v2182
    %v2184 = vlaneseq
    %v2185 = vshrl.u32 %v2184, 7
    %v2186 = vsub.s32 %v2183, %v2185
    %v2187 = vrot.slane %v2104, %v2186
    %v2189 = vunpack.c.l.s4 1983009808
    %v2190 = vunpack.c.0.s8 %v2189
    %v2191 = vlaneseq
    %v2192 = vshrl.u32 %v2191, 7
    %v2193 = vsub.s32 %v2190, %v2192
    %v2194 = vrot.slane %v2180, %v2193
    %v2195 = vcombine.high %v2187, %v2187
    %v2196 = vcombine.high %v2194, %v2194
    %v2197 = vcombine.high %v2105, %v2105
    %v2199 = vunpack.c.l.s4 1983009808
    %v2200 = vunpack.c.0.s8 %v2199
    %v2201 = vlaneseq
    %v2202 = vshrl.u32 %v2201, 7
    %v2203 = vsub.s32 %v2200, %v2202
    %v2204 = vrot.slane %v2105, %v2203
    %v2206 = vunpack.c.l.s4 1983009808
    %v2207 = vunpack.c.0.s8 %v2206
    %v2208 = vlaneseq
    %v2209 = vshrl.u32 %v2208, 7
    %v2210 = vsub.s32 %v2207, %v2209
    %v2211 = vrot.slane %v2197, %v2210
    %v2212 = vcombine.high %v2204, %v2204
    %v2213 = vcombine.high %v2211, %v2211
    %v2238 = vadd.f32 %v1860, %v2119
    %v2239 = vadd.f32 %v1861, %v2127
    %v2240 = vadd.f32 %v1862, %v2126
    %v2241 = vadd.f32 %v1863, %v2128
    %v2242 = vadd.f32 %v1864, %v2136
    %v2243 = vadd.f32 %v1865, %v2144
    %v2244 = vadd.f32 %v1866, %v2143
    %v2245 = vadd.f32 %v1867, %v2145
    %v2246 = vadd.f32 %v1868, %v2153
    %v2247 = vadd.f32 %v1869, %v2161
    %v2248 = vadd.f32 %v1870, %v2160
    %v2249 = vadd.f32 %v1871, %v2162
    %v2250 = vadd.f32 %v1872, %v2170
    %v2251 = vadd.f32 %v1873, %v2178
    %v2252 = vadd.f32 %v1874, %v2177
    %v2253 = vadd.f32 %v1875, %v2179
    %v2254 = vadd.f32 %v1876, %v2187
    %v2255 = vadd.f32 %v1877, %v2195
    %v2256 = vadd.f32 %v1878, %v2194
    %v2257 = vadd.f32 %v1879, %v2196
    %v2258 = vadd.f32 %v1880, %v2204
    %v2259 = vadd.f32 %v1881, %v2212
    %v2260 = vadd.f32 %v1882, %v2211
    %v2261 = vadd.f32 %v1883, %v2213
    %v2286 = vcombine.low %v2238, %v2239
    %v2287 = vcombine.low %v2240, %v2241
    %v2289 = vunpack.c.l.s4 1983009808
    %v2290 = vunpack.c.0.s8 %v2289
    %v2291 = vlaneseq
    %v2292 = vshrl.u32 %v2291, 7
    %v2293 = vsub.s32 %v2290, %v2292
    %v2294 = vrot.slane %v2286, %v2293
    %v2296 = vunpack.c.l.s4 1983009808
    %v2297 = vunpack.c.0.s8 %v2296
    %v2298 = vlaneseq
    %v2299 = vshrl.u32 %v2298, 7
    %v2300 = vsub.s32 %v2297, %v2299
    %v2301 = vrot.slane %v2287, %v2300
    %v2302 = vcombine.low %v2294, %v2301
    %v2303 = vcombine.low %v2242, %v2243
    %v2304 = vcombine.low %v2244, %v2245
    %v2306 = vunpack.c.l.s4 1983009808
    %v2307 = vunpack.c.0.s8 %v2306
    %v2308 = vlaneseq
    %v2309 = vshrl.u32 %v2308, 7
    %v2310 = vsub.s32 %v2307, %v2309
    %v2311 = vrot.slane %v2303, %v2310
    %v2313 = vunpack.c.l.s4 1983009808
    %v2314 = vunpack.c.0.s8 %v2313
    %v2315 = vlaneseq
    %v2316 = vshrl.u32 %v2315, 7
    %v2317 = vsub.s32 %v2314, %v2316
    %v2318 = vrot.slane %v2304, %v2317
    %v2319 = vcombine.low %v2311, %v2318
    %v2320 = vcombine.low %v2246, %v2247
    %v2321 = vcombine.low %v2248, %v2249
    %v2323 = vunpack.c.l.s4 1983009808
    %v2324 = vunpack.c.0.s8 %v2323
    %v2325 = vlaneseq
    %v2326 = vshrl.u32 %v2325, 7
    %v2327 = vsub.s32 %v2324, %v2326
    %v2328 = vrot.slane %v2320, %v2327
    %v2330 = vunpack.c.l.s4 1983009808
    %v2331 = vunpack.c.0.s8 %v2330
    %v2332 = vlaneseq
    %v2333 = vshrl.u32 %v2332, 7
    %v2334 = vsub.s32 %v2331, %v2333
    %v2335 = vrot.slane %v2321, %v2334
    %v2336 = vcombine.low %v2328, %v2335
    %v2337 = vcombine.low %v2250, %v2251
    %v2338 = vcombine.low %v2252, %v2253
    %v2340 = vunpack.c.l.s4 1983009808
    %v2341 = vunpack.c.0.s8 %v2340
    %v2342 = vlaneseq
    %v2343 = vshrl.u32 %v2342, 7
    %v2344 = vsub.s32 %v2341, %v2343
    %v2345 = vrot.slane %v2337, %v2344
    %v2347 = vunpack.c.l.s4 1983009808
    %v2348 = vunpack.c.0.s8 %v2347
    %v2349 = vlaneseq
    %v2350 = vshrl.u32 %v2349, 7
    %v2351 = vsub.s32 %v2348, %v2350
    %v2352 = vrot.slane %v2338, %v2351
    %v2353 = vcombine.low %v2345, %v2352
    %v2354 = vcombine.low %v2254, %v2255
    %v2355 = vcombine.low %v2256, %v2257
    %v2357 = vunpack.c.l.s4 1983009808
    %v2358 = vunpack.c.0.s8 %v2357
    %v2359 = vlaneseq
    %v2360 = vshrl.u32 %v2359, 7
    %v2361 = vsub.s32 %v2358, %v2360
    %v2362 = vrot.slane %v2354, %v2361
    %v2364 = vunpack.c.l.s4 1983009808
    %v2365 = vunpack.c.0.s8 %v2364
    %v2366 = vlaneseq
    %v2367 = vshrl.u32 %v2366, 7
    %v2368 = vsub.s32 %v2365, %v2367
    %v2369 = vrot.slane %v2355, %v2368
    %v2370 = vcombine.low %v2362, %v2369
    %v2371 = vcombine.low %v2258, %v2259
    %v2372 = vcombine.low %v2260, %v2261
    %v2374 = vunpack.c.l.s4 1983009808
    %v2375 = vunpack.c.0.s8 %v2374
    %v2376 = vlaneseq
    %v2377 = vshrl.u32 %v2376, 7
    %v2378 = vsub.s32 %v2375, %v2377
    %v2379 = vrot.slane %v2371, %v2378
    %v2381 = vunpack.c.l.s4 1983009808
    %v2382 = vunpack.c.0.s8 %v2381
    %v2383 = vlaneseq
    %v2384 = vshrl.u32 %v2383, 7
    %v2385 = vsub.s32 %v2382, %v2384
    %v2386 = vrot.slane %v2372, %v2385
    %v2387 = vcombine.low %v2379, %v2386
    %2394 = vst [vmem:[%s10] sm:$0xff] %v2302
    %2395 = vst [vmem:[%s10 + $0x8] sm:$0xff] %v2319
    %2396 = vst [vmem:[%s10 + $0x10] sm:$0xff] %v2336
    %2397 = vst [vmem:[%s10 + $0x18] sm:$0xff] %v2353
    %2398 = vst [vmem:[%s10 + $0x20] sm:$0xff] %v2370
    %2399 = vst [vmem:[%s10 + $0x28] sm:$0xff] %v2387
    // Predicated region
    $region42: #{patch_smoothing_forward.1} parent=1 // pred_check
      _
    $region43: #{patch_smoothing_forward.1} parent=1 // pred_check_branch
      %2401 = sbr.rel (0) target = $region45
    $region44: #{patch_smoothing_forward.1} parent=1 // pred_region
      _
    $region45: #{patch_smoothing_forward.1} parent=1 // pred_fallthru
      _
    // Predicated region
    $region46: #{patch_smoothing_forward.1} parent=1 // pred_check
      _
    $region47: #{patch_smoothing_forward.1} parent=1 // pred_check_branch
      %2403 = sbr.rel (0) target = $region49
    $region48: #{patch_smoothing_forward.1} parent=1 // pred_region
      _
    $region49: #{patch_smoothing_forward.1} parent=1 // pred_fallthru
      _
    // Predicated region
    $region50: #{patch_smoothing_forward.1} parent=1 // pred_check
      _
    $region51: #{patch_smoothing_forward.1} parent=1 // pred_check_branch
      %2405 = sbr.rel (0) target = $region53
    $region52: #{patch_smoothing_forward.1} parent=1 // pred_region
      _
    $region53: #{patch_smoothing_forward.1} parent=1 // pred_fallthru
      _
    // Predicated region
    $region54: #{patch_smoothing_forward.1} parent=1 // pred_check
      _
    $region55: #{patch_smoothing_forward.1} parent=1 // pred_check_branch
      %2407 = sbr.rel (0) target = $region57
    $region56: #{patch_smoothing_forward.1} parent=1 // pred_region
      _
    $region57: #{patch_smoothing_forward.1} parent=1 // pred_fallthru
      _
    %2408 = vsyncpa [#allocation3], 1

</llo_original>
